<compile_context>
chip_gen: v6e
topology: v6e:2x2x1
jax: 0.10.0
libtpu: 0.0.40
codegen_flags: <defaults>
</compile_context>

<pallas_src>
import jax
import jax.numpy as jnp
from jax import lax
from jax.experimental import pallas as pl
from jax.experimental.pallas import tpu as pltpu

# ----------------------------- configuration --------------------------------
BATCH = 2
N_INPUT = 4        # input channels
HIDDEN = 16        # AE hidden width
N_Z = 32           # latent channels (n_z)
N_CLUSTERS = 8     # n_clusters
H = W = 8          # spatial size (1x1 convs keep it for z) -> B*H*W = 128 lanes

SINKHORN_EPS = 0.05
SINKHORN_ITERS = 3
CLUSTER_ITERS = 3  # n_iters in ClusterNet_Contrast.cluster

_VMEM = pl.BlockSpec(memory_space=pltpu.MemorySpace.VMEM)


def _l2norm_rows(p):
    # l2-normalize over the last axis (feature dim).
    return p * lax.rsqrt(jnp.sum(p * p, axis=-1, keepdims=True) + 1e-12)


# ----------------------------- fused forward kernel -------------------------
def _fused_forward_kernel(x_ref, w1e_ref, b1e_ref, w2e_ref, b2e_ref,
                          w1d_ref, b1d_ref, w2d_ref, b2d_ref, p0_ref,
                          xbar_ref, z_ref, logits_ref, idx_ref, protos_ref):
    _, M = x_ref.shape                       # M = B * H * W (lane axis)
    BK, D = p0_ref.shape                     # stacked prototypes (B*K, D)
    K = logits_ref.shape[0]
    B = BK // K
    N = M // B                               # samples per batch item (H*W)

    x_cf = x_ref[...]                        # (Cin, M) lane-dense slab

    # ------------------- fused 1x1-conv autoencoder -------------------------
    # TODO(synk): the AE architecture ('arch') is not given in the reference
    # snippet; a minimal 1x1-conv encoder/decoder (n_input -> hidden -> n_z ->
    # hidden -> n_input) is used, stored channels-first: y = W @ x + b.
    def dense(w_ref, b_ref, a, relu):
        y = jnp.dot(w_ref[...], a, preferred_element_type=jnp.float32)
        y = y + b_ref[...]
        return jnp.maximum(y, 0.0) if relu else y

    h1 = dense(w1e_ref, b1e_ref, x_cf, True)        # (HIDDEN, M)
    z_cf = dense(w2e_ref, b2e_ref, h1, False)       # (D, M)      latent z
    d1 = dense(w1d_ref, b1d_ref, z_cf, True)        # (HIDDEN, M)
    xb_cf = dense(w2d_ref, b2d_ref, d1, False)      # (Cin, M)    x_bar

    xbar_ref[...] = xb_cf                           # single lane-dense stores
    z_ref[...] = z_cf

    # ------------------------------ clustering ------------------------------
    # l2-normalize z over the feature (sublane) axis for the score matmul only;
    # the prototype update below uses raw z (matches the reference).
    zn_cf = z_cf * lax.rsqrt(jnp.sum(z_cf * z_cf, axis=0, keepdims=True) + 1e-12)

    # stacked (B*K, D) prototypes, l2-normalized per row (matches reference).
    protos = _l2norm_rows(p0_ref[...])

    # loop-invariant iotas / masks (hoisted out of the cluster loop).
    row_id = lax.broadcasted_iota(jnp.int32, (K, M), 0)          # cluster id
    lane_id = lax.broadcasted_iota(jnp.int32, (1, M), 1)
    masks = [(lane_id >= b * N) & (lane_id < (b + 1) * N) for b in range(B)]

    def pick_batch_rows(stacked):
        # (B*K, M) -> (K, M): for lanes of batch b keep sublane rows b*K:(b+1)*K.
        out = stacked[(B - 1) * K:B * K, :]
        for b in range(B - 2, -1, -1):
            out = jnp.where(masks[b], stacked[b * K:(b + 1) * K, :], out)
        return out

    def per_batch(vals):
        # combine per-batch (1,1) / (K,1) values over disjoint lane blocks.
        out = vals[B - 1]
        for b in range(B - 2, -1, -1):
            out = jnp.where(masks[b], vals[b], out)
        return out

    q_t = jnp.zeros((K, M), jnp.float32)
    idx = jnp.zeros((1, M), jnp.int32)

    for _ in range(CLUSTER_ITERS):
        # scores: one fused (B*K, D) @ (D, M) MXU push, then sublane-half pick.
        s_stack = jnp.dot(protos, zn_cf, preferred_element_type=jnp.float32)
        s_t = pick_batch_rows(s_stack)                           # (K, M)

        # softmax over clusters (sublane axis); exact reciprocal here — its
        # error would be amplified by exp(p / eps) below.
        s_t = s_t - jnp.max(s_t, axis=0, keepdims=True)
        e = jnp.exp(s_t)
        p_t = e * (1.0 / jnp.sum(e, axis=0, keepdims=True))

        # TODO(synk): distributed_sinkhorn is not defined in the reference
        # snippet; the standard single-device SwAV Sinkhorn-Knopp
        # (eps=0.05, 3 iterations) applied to the softmax probs is used here.
        qp = jnp.exp(p_t * (1.0 / SINKHORN_EPS))
        # per-batch total: exact reciprocal taken pre-broadcast ((1,1) each).
        inv_tot = [1.0 / jnp.sum(jnp.where(masks[b], qp, 0.0), keepdims=True)
                   for b in range(B)]
        qp = qp * per_batch(inv_tot)
        for it in range(SINKHORN_ITERS):
            # row (per-cluster, per-batch) normalization; recip pre-broadcast
            # on (K,1) values instead of the broadcast (K,M) vreg.
            inv_rows = [1.0 / jnp.sum(jnp.where(masks[b], qp, 0.0),
                                      axis=1, keepdims=True)
                        for b in range(B)]                       # (K, 1) each
            qp = qp * per_batch(inv_rows) * (1.0 / K)
            # column (per-sample) normalization over the sublane axis.
            cols = jnp.sum(qp, axis=0, keepdims=True)            # (1, M)
            if it == SINKHORN_ITERS - 1:
                inv_cols = 1.0 / cols            # exact: feeds logits output
            else:
                inv_cols = pl.reciprocal(cols, approx=True)
            qp = qp * inv_cols * (1.0 / N)
        q_t = qp * float(N)                                      # logits

        # argmax over clusters (first max, like torch.argmax) + one-hot.
        is_max = q_t >= jnp.max(q_t, axis=0, keepdims=True)
        idx = jnp.min(jnp.where(is_max, row_id, jnp.int32(K)),
                      axis=0, keepdims=True)                     # (1, M)
        one_hot = row_id == idx                                  # (K, M) bool
        # stacked, batch-masked one-hot (B*K, M): sublane concat of whole
        # (8,128) vregs — no lane shuffles.
        oh_stack = jnp.concatenate(
            [jnp.where(masks[b] & one_hot, 1.0, 0.0) for b in range(B)], axis=0)

        # prototype update: one fused (B*K, M) x (D, M)^T MXU push.
        num = lax.dot_general(oh_stack, z_cf, (((1,), (1,)), ((), ())),
                              preferred_element_type=jnp.float32)  # (BK, D)
        cnt = jnp.sum(oh_stack, axis=1, keepdims=True)             # (BK, 1)
        safe = jnp.where(cnt > 0, cnt, 1.0)
        # count division is scale-only (l2-normalized right after), so the
        # approximate reciprocal cannot change the prototype direction;
        # cnt == 0 rows become 0 (reference's nan_to_num).
        protos = _l2norm_rows(
            jnp.where(cnt > 0, num * pl.reciprocal(safe, approx=True), 0.0))

    # ------------------------- lane-dense stores -----------------------------
    logits_ref[...] = q_t                                        # (K, B*N)
    idx_ref[...] = idx                                           # (1, B*N)
    protos_ref[...] = protos                                     # (B*K, D)


# ----------------------------- parameters -----------------------------------
def init_params(key):
    ks = jax.random.split(key, 4)

    def lin(k, cin, cout):
        w = jax.random.normal(k, (cout, cin), jnp.float32) / jnp.sqrt(float(cin))
        b = jnp.zeros((cout, 1), jnp.float32)
        return w, b

    p = {}
    p["enc1_w"], p["enc1_b"] = lin(ks[0], N_INPUT, HIDDEN)
    p["enc2_w"], p["enc2_b"] = lin(ks[1], HIDDEN, N_Z)
    p["dec1_w"], p["dec1_b"] = lin(ks[2], N_Z, HIDDEN)
    p["dec2_w"], p["dec2_b"] = lin(ks[3], HIDDEN, N_INPUT)
    return p


# ----------------------------- forward ---------------------------------------
@jax.jit
def clusternet_contrast_forward(x, params, protos_init):
    """x: (B, C_in, H, W) NCHW, like the PyTorch module."""
    B, Cin, Hh, Ww = x.shape
    HW = Hh * Ww
    M = B * HW
    K, D = protos_init.shape[1], protos_init.shape[2]

    # lane-dense channels-first slab: x_cf[c, b*HW + n] = x[b, c, n]
    x_cf = jnp.transpose(x.reshape(B, Cin, HW), (1, 0, 2)).reshape(Cin, M)
    p0 = protos_init.reshape(B * K, D)

    out_shapes = (
        jax.ShapeDtypeStruct((Cin, M), jnp.float32),    # x_bar slab
        jax.ShapeDtypeStruct((D, M), jnp.float32),      # z slab
        jax.ShapeDtypeStruct((K, M), jnp.float32),      # logits slab
        jax.ShapeDtypeStruct((1, M), jnp.int32),        # indexes, flat
        jax.ShapeDtypeStruct((B * K, D), jnp.float32),  # prototypes, stacked
    )
    xbar_cf, z_cf, logits_cf, idx, protos = pl.pallas_call(
        _fused_forward_kernel,
        out_shape=out_shapes,
        in_specs=[_VMEM] * 10,
        out_specs=(_VMEM,) * 5,
    )(x_cf,
      params["enc1_w"], params["enc1_b"],
      params["enc2_w"], params["enc2_b"],
      params["dec1_w"], params["dec1_b"],
      params["dec2_w"], params["dec2_b"],
      p0)

    # wrapper does only the tiny slab -> NCHW split/transpose (negligible XLA).
    def slab_to_nchw(a, C):
        return jnp.transpose(a.reshape(C, B, HW), (1, 0, 2)).reshape(B, C, Hh, Ww)

    x_bar = slab_to_nchw(xbar_cf, Cin)
    z_out = slab_to_nchw(z_cf, D)
    logits = slab_to_nchw(logits_cf, K)
    indexes = idx.reshape(B, Hh, Ww)
    prototypes = protos.reshape(B, K, D)
    preds = {"logits": logits, "indexes": indexes}
    return x_bar, z_out, preds, prototypes


# ----------------------------- main ------------------------------------------
if __name__ == "__main__":
    key = jax.random.PRNGKey(0)
    k_x, k_p, k_proto = jax.random.split(key, 3)

    x = jax.random.normal(k_x, (BATCH, N_INPUT, H, W), jnp.float32)
    params = init_params(k_p)
    # torch.randn prototypes, generated deterministically here and passed in.
    protos_init = jax.random.normal(k_proto, (BATCH, N_CLUSTERS, N_Z), jnp.float32)

    x_bar, z, preds, prototypes = clusternet_contrast_forward(x, params, protos_init)
    jax.block_until_ready((x_bar, z, preds["logits"], preds["indexes"], prototypes))

    assert x_bar.shape == (BATCH, N_INPUT, H, W)
    assert z.shape == (BATCH, N_Z, H, W)
    assert preds["logits"].shape == (BATCH, N_CLUSTERS, H, W)
    assert preds["indexes"].shape == (BATCH, H, W)
    assert preds["indexes"].dtype == jnp.int32
    assert prototypes.shape == (BATCH, N_CLUSTERS, N_Z)
    print("KERNEL_OK")
</pallas_src>

<mosaic_0001>
module attributes {stable_mosaic.version = 11 : i64} {
  func.func @_fused_forward_kernel(%arg0: memref<4x128xf32, #tpu.memory_space<vmem>>, %arg1: memref<16x4xf32, #tpu.memory_space<vmem>>, %arg2: memref<16x1xf32, #tpu.memory_space<vmem>>, %arg3: memref<32x16xf32, #tpu.memory_space<vmem>>, %arg4: memref<32x1xf32, #tpu.memory_space<vmem>>, %arg5: memref<16x32xf32, #tpu.memory_space<vmem>>, %arg6: memref<16x1xf32, #tpu.memory_space<vmem>>, %arg7: memref<4x16xf32, #tpu.memory_space<vmem>>, %arg8: memref<4x1xf32, #tpu.memory_space<vmem>>, %arg9: memref<16x32xf32, #tpu.memory_space<vmem>>, %arg10: memref<4x128xf32, #tpu.memory_space<vmem>>, %arg11: memref<32x128xf32, #tpu.memory_space<vmem>>, %arg12: memref<8x128xf32, #tpu.memory_space<vmem>>, %arg13: memref<1x128xi32, #tpu.memory_space<vmem>>, %arg14: memref<16x32xf32, #tpu.memory_space<vmem>>) attributes {dimension_semantics = [], scalar_prefetch = 0 : i64, scratch_operands = 0 : i64, tpu.core_type = #tpu.core_type<tc>} {
    %c0 = arith.constant 0 : index
    %c0_0 = arith.constant 0 : index
    %0 = vector.load %arg0[%c0, %c0_0] : memref<4x128xf32, #tpu.memory_space<vmem>>, vector<4x128xf32>
    %c0_1 = arith.constant 0 : index
    %c0_2 = arith.constant 0 : index
    %1 = vector.load %arg1[%c0_1, %c0_2] : memref<16x4xf32, #tpu.memory_space<vmem>>, vector<16x4xf32>
    %cst = arith.constant dense<0.000000e+00> : vector<16x128xf32>
    %2 = tpu.matmul %1, %0, %cst {dimension_numbers = #tpu.dot_dimension_numbers<[1], [0], [0], [1], [0, 0, 1, 1], [], []>} : vector<16x4xf32>, vector<4x128xf32>, vector<16x128xf32> -> vector<16x128xf32>
    %c0_3 = arith.constant 0 : index
    %c0_4 = arith.constant 0 : index
    %3 = vector.load %arg2[%c0_3, %c0_4] : memref<16x1xf32, #tpu.memory_space<vmem>>, vector<16x1xf32>
    %4 = vector.broadcast %3 : vector<16x1xf32> to vector<16x128xf32>
    %5 = arith.addf %2, %4 : vector<16x128xf32>
    %cst_5 = arith.constant 0.000000e+00 : f32
    %6 = vector.broadcast %cst_5 : f32 to vector<16x128xf32>
    %7 = arith.maximumf %5, %6 : vector<16x128xf32>
    %c0_6 = arith.constant 0 : index
    %c0_7 = arith.constant 0 : index
    %8 = vector.load %arg3[%c0_6, %c0_7] : memref<32x16xf32, #tpu.memory_space<vmem>>, vector<32x16xf32>
    %cst_8 = arith.constant dense<0.000000e+00> : vector<32x128xf32>
    %9 = tpu.matmul %8, %7, %cst_8 {dimension_numbers = #tpu.dot_dimension_numbers<[1], [0], [0], [1], [0, 0, 1, 1], [], []>} : vector<32x16xf32>, vector<16x128xf32>, vector<32x128xf32> -> vector<32x128xf32>
    %c0_9 = arith.constant 0 : index
    %c0_10 = arith.constant 0 : index
    %10 = vector.load %arg4[%c0_9, %c0_10] : memref<32x1xf32, #tpu.memory_space<vmem>>, vector<32x1xf32>
    %11 = vector.broadcast %10 : vector<32x1xf32> to vector<32x128xf32>
    %12 = arith.addf %9, %11 : vector<32x128xf32>
    %c0_11 = arith.constant 0 : index
    %c0_12 = arith.constant 0 : index
    %13 = vector.load %arg5[%c0_11, %c0_12] : memref<16x32xf32, #tpu.memory_space<vmem>>, vector<16x32xf32>
    %cst_13 = arith.constant dense<0.000000e+00> : vector<16x128xf32>
    %14 = tpu.matmul %13, %12, %cst_13 {dimension_numbers = #tpu.dot_dimension_numbers<[1], [0], [0], [1], [0, 0, 1, 1], [], []>} : vector<16x32xf32>, vector<32x128xf32>, vector<16x128xf32> -> vector<16x128xf32>
    %c0_14 = arith.constant 0 : index
    %c0_15 = arith.constant 0 : index
    %15 = vector.load %arg6[%c0_14, %c0_15] : memref<16x1xf32, #tpu.memory_space<vmem>>, vector<16x1xf32>
    %16 = vector.broadcast %15 : vector<16x1xf32> to vector<16x128xf32>
    %17 = arith.addf %14, %16 : vector<16x128xf32>
    %cst_16 = arith.constant 0.000000e+00 : f32
    %18 = vector.broadcast %cst_16 : f32 to vector<16x128xf32>
    %19 = arith.maximumf %17, %18 : vector<16x128xf32>
    %c0_17 = arith.constant 0 : index
    %c0_18 = arith.constant 0 : index
    %20 = vector.load %arg7[%c0_17, %c0_18] : memref<4x16xf32, #tpu.memory_space<vmem>>, vector<4x16xf32>
    %cst_19 = arith.constant dense<0.000000e+00> : vector<4x128xf32>
    %21 = tpu.matmul %20, %19, %cst_19 {dimension_numbers = #tpu.dot_dimension_numbers<[1], [0], [0], [1], [0, 0, 1, 1], [], []>} : vector<4x16xf32>, vector<16x128xf32>, vector<4x128xf32> -> vector<4x128xf32>
    %c0_20 = arith.constant 0 : index
    %c0_21 = arith.constant 0 : index
    %22 = vector.load %arg8[%c0_20, %c0_21] : memref<4x1xf32, #tpu.memory_space<vmem>>, vector<4x1xf32>
    %23 = vector.broadcast %22 : vector<4x1xf32> to vector<4x128xf32>
    %24 = arith.addf %21, %23 : vector<4x128xf32>
    %c0_22 = arith.constant 0 : index
    %c0_23 = arith.constant 0 : index
    %25 = vector.load %arg10[%c0_22, %c0_23] : memref<4x128xf32, #tpu.memory_space<vmem>>, vector<4x128xf32>
    tpu.vector_store %arg10[%c0_22, %c0_23], %24 {strides = array<i32>} : memref<4x128xf32, #tpu.memory_space<vmem>>, vector<4x128xf32>,
    %c0_24 = arith.constant 0 : index
    %c0_25 = arith.constant 0 : index
    %26 = vector.load %arg11[%c0_24, %c0_25] : memref<32x128xf32, #tpu.memory_space<vmem>>, vector<32x128xf32>
    tpu.vector_store %arg11[%c0_24, %c0_25], %12 {strides = array<i32>} : memref<32x128xf32, #tpu.memory_space<vmem>>, vector<32x128xf32>,
    %27 = arith.mulf %12, %12 : vector<32x128xf32>
    %cst_26 = arith.constant dense<0.000000e+00> : vector<128xf32>
    %28 = vector.multi_reduction <add>, %27, %cst_26 [0] : vector<32x128xf32> to vector<128xf32>
    %29 = vector.shape_cast %28 : vector<128xf32> to vector<1x128xf32>
    %cst_27 = arith.constant 9.99999996E-13 : f32
    %30 = vector.broadcast %cst_27 : f32 to vector<1x128xf32>
    %31 = arith.addf %29, %30 : vector<1x128xf32>
    %32 = math.rsqrt %31 : vector<1x128xf32>
    %33 = vector.broadcast %32 : vector<1x128xf32> to vector<32x128xf32>
    %34 = arith.mulf %12, %33 : vector<32x128xf32>
    %c0_28 = arith.constant 0 : index
    %c0_29 = arith.constant 0 : index
    %35 = vector.load %arg9[%c0_28, %c0_29] : memref<16x32xf32, #tpu.memory_space<vmem>>, vector<16x32xf32>
    %36 = arith.mulf %35, %35 : vector<16x32xf32>
    %cst_30 = arith.constant dense<0.000000e+00> : vector<16xf32>
    %37 = vector.multi_reduction <add>, %36, %cst_30 [1] : vector<16x32xf32> to vector<16xf32>
    %38 = vector.shape_cast %37 : vector<16xf32> to vector<16x1xf32>
    %cst_31 = arith.constant 9.99999996E-13 : f32
    %39 = vector.broadcast %cst_31 : f32 to vector<16x1xf32>
    %40 = arith.addf %38, %39 : vector<16x1xf32>
    %41 = math.rsqrt %40 : vector<16x1xf32>
    %42 = vector.broadcast %41 : vector<16x1xf32> to vector<16x32xf32>
    %43 = arith.mulf %35, %42 : vector<16x32xf32>
    %44 = tpu.iota {dimensions = array<i32: 0>} : vector<8x128xi32>
    %45 = tpu.iota {dimensions = array<i32: 1>} : vector<1x128xi32>
    %c0_i32 = arith.constant 0 : i32
    %46 = vector.broadcast %c0_i32 : i32 to vector<1x128xi32>
    %47 = arith.cmpi sge, %45, %46 : vector<1x128xi32>
    %c64_i32 = arith.constant 64 : i32
    %48 = vector.broadcast %c64_i32 : i32 to vector<1x128xi32>
    %49 = arith.cmpi slt, %45, %48 : vector<1x128xi32>
    %50 = arith.andi %47, %49 : vector<1x128xi1>
    %c64_i32_32 = arith.constant 64 : i32
    %51 = vector.broadcast %c64_i32_32 : i32 to vector<1x128xi32>
    %52 = arith.cmpi sge, %45, %51 : vector<1x128xi32>
    %c128_i32 = arith.constant 128 : i32
    %53 = vector.broadcast %c128_i32 : i32 to vector<1x128xi32>
    %54 = arith.cmpi slt, %45, %53 : vector<1x128xi32>
    %55 = arith.andi %52, %54 : vector<1x128xi1>
    %cst_33 = arith.constant dense<0.000000e+00> : vector<16x128xf32>
    %56 = tpu.matmul %43, %34, %cst_33 {dimension_numbers = #tpu.dot_dimension_numbers<[1], [0], [0], [1], [0, 0, 1, 1], [], []>} : vector<16x32xf32>, vector<32x128xf32>, vector<16x128xf32> -> vector<16x128xf32>
    %57 = vector.extract_strided_slice %56 {offsets = [8, 0], sizes = [8, 128], strides = [1, 1]} : vector<16x128xf32> to vector<8x128xf32>
    %58 = vector.extract_strided_slice %56 {offsets = [0, 0], sizes = [8, 128], strides = [1, 1]} : vector<16x128xf32> to vector<8x128xf32>
    %59 = vector.shape_cast %50 : vector<1x128xi1> to vector<1x128xi1>
    %60 = vector.broadcast %59 : vector<1x128xi1> to vector<8x128xi1>
    %61 = arith.select %60, %58, %57 : vector<8x128xi1>, vector<8x128xf32>
    %cst_34 = arith.constant dense<0xFF800000> : vector<128xf32>
    %62 = vector.multi_reduction <maximumf>, %61, %cst_34 [0] : vector<8x128xf32> to vector<128xf32>
    %63 = vector.shape_cast %62 : vector<128xf32> to vector<1x128xf32>
    %64 = vector.broadcast %63 : vector<1x128xf32> to vector<8x128xf32>
    %65 = arith.subf %61, %64 : vector<8x128xf32>
    %66 = math.exp %65 : vector<8x128xf32>
    %cst_35 = arith.constant dense<0.000000e+00> : vector<128xf32>
    %67 = vector.multi_reduction <add>, %66, %cst_35 [0] : vector<8x128xf32> to vector<128xf32>
    %68 = vector.shape_cast %67 : vector<128xf32> to vector<1x128xf32>
    %cst_36 = arith.constant 1.000000e+00 : f32
    %69 = vector.broadcast %cst_36 : f32 to vector<1x128xf32>
    %70 = arith.divf %69, %68 : vector<1x128xf32>
    %71 = vector.broadcast %70 : vector<1x128xf32> to vector<8x128xf32>
    %72 = arith.mulf %66, %71 : vector<8x128xf32>
    %cst_37 = arith.constant 2.000000e+01 : f32
    %73 = vector.broadcast %cst_37 : f32 to vector<8x128xf32>
    %74 = arith.mulf %72, %73 : vector<8x128xf32>
    %75 = math.exp %74 : vector<8x128xf32>
    %cst_38 = arith.constant 0.000000e+00 : f32
    %76 = vector.shape_cast %50 : vector<1x128xi1> to vector<1x128xi1>
    %77 = vector.broadcast %76 : vector<1x128xi1> to vector<8x128xi1>
    %78 = vector.broadcast %cst_38 : f32 to vector<8x128xf32>
    %79 = arith.select %77, %75, %78 : vector<8x128xi1>, vector<8x128xf32>
    %80 = vector.shape_cast %79 : vector<8x128xf32> to vector<1x8x128xf32>
    %cst_39 = arith.constant dense<0.000000e+00> : vector<1xf32>
    %81 = vector.multi_reduction <add>, %80, %cst_39 [1, 2] : vector<1x8x128xf32> to vector<1xf32>
    %82 = vector.shape_cast %81 : vector<1xf32> to vector<1x1x1xf32>
    %83 = vector.extract %82[0, 0, 0] : f32 from vector<1x1x1xf32>
    %84 = vector.broadcast %83 : f32 to vector<1x1xf32>
    %cst_40 = arith.constant 1.000000e+00 : f32
    %85 = vector.broadcast %cst_40 : f32 to vector<1x1xf32>
    %86 = arith.divf %85, %84 : vector<1x1xf32>
    %cst_41 = arith.constant 0.000000e+00 : f32
    %87 = vector.shape_cast %55 : vector<1x128xi1> to vector<1x128xi1>
    %88 = vector.broadcast %87 : vector<1x128xi1> to vector<8x128xi1>
    %89 = vector.broadcast %cst_41 : f32 to vector<8x128xf32>
    %90 = arith.select %88, %75, %89 : vector<8x128xi1>, vector<8x128xf32>
    %91 = vector.shape_cast %90 : vector<8x128xf32> to vector<1x8x128xf32>
    %cst_42 = arith.constant dense<0.000000e+00> : vector<1xf32>
    %92 = vector.multi_reduction <add>, %91, %cst_42 [1, 2] : vector<1x8x128xf32> to vector<1xf32>
    %93 = vector.shape_cast %92 : vector<1xf32> to vector<1x1x1xf32>
    %94 = vector.extract %93[0, 0, 0] : f32 from vector<1x1x1xf32>
    %95 = vector.broadcast %94 : f32 to vector<1x1xf32>
    %cst_43 = arith.constant 1.000000e+00 : f32
    %96 = vector.broadcast %cst_43 : f32 to vector<1x1xf32>
    %97 = arith.divf %96, %95 : vector<1x1xf32>
    %98 = vector.shape_cast %86 : vector<1x1xf32> to vector<1x1xf32>
    %99 = vector.broadcast %98 : vector<1x1xf32> to vector<1x128xf32>
    %100 = vector.shape_cast %97 : vector<1x1xf32> to vector<1x1xf32>
    %101 = vector.broadcast %100 : vector<1x1xf32> to vector<1x128xf32>
    %102 = arith.select %50, %99, %101 : vector<1x128xi1>, vector<1x128xf32>
    %103 = vector.broadcast %102 : vector<1x128xf32> to vector<8x128xf32>
    %104 = arith.mulf %75, %103 : vector<8x128xf32>
    %cst_44 = arith.constant 0.000000e+00 : f32
    %105 = vector.shape_cast %50 : vector<1x128xi1> to vector<1x128xi1>
    %106 = vector.broadcast %105 : vector<1x128xi1> to vector<8x128xi1>
    %107 = vector.broadcast %cst_44 : f32 to vector<8x128xf32>
    %108 = arith.select %106, %104, %107 : vector<8x128xi1>, vector<8x128xf32>
    %cst_45 = arith.constant dense<0.000000e+00> : vector<8xf32>
    %109 = vector.multi_reduction <add>, %108, %cst_45 [1] : vector<8x128xf32> to vector<8xf32>
    %110 = vector.shape_cast %109 : vector<8xf32> to vector<8x1xf32>
    %cst_46 = arith.constant 1.000000e+00 : f32
    %111 = vector.broadcast %cst_46 : f32 to vector<8x1xf32>
    %112 = arith.divf %111, %110 : vector<8x1xf32>
    %cst_47 = arith.constant 0.000000e+00 : f32
    %113 = vector.shape_cast %55 : vector<1x128xi1> to vector<1x128xi1>
    %114 = vector.broadcast %113 : vector<1x128xi1> to vector<8x128xi1>
    %115 = vector.broadcast %cst_47 : f32 to vector<8x128xf32>
    %116 = arith.select %114, %104, %115 : vector<8x128xi1>, vector<8x128xf32>
    %cst_48 = arith.constant dense<0.000000e+00> : vector<8xf32>
    %117 = vector.multi_reduction <add>, %116, %cst_48 [1] : vector<8x128xf32> to vector<8xf32>
    %118 = vector.shape_cast %117 : vector<8xf32> to vector<8x1xf32>
    %cst_49 = arith.constant 1.000000e+00 : f32
    %119 = vector.broadcast %cst_49 : f32 to vector<8x1xf32>
    %120 = arith.divf %119, %118 : vector<8x1xf32>
    %121 = vector.shape_cast %50 : vector<1x128xi1> to vector<1x128xi1>
    %122 = vector.broadcast %121 : vector<1x128xi1> to vector<8x128xi1>
    %123 = vector.shape_cast %112 : vector<8x1xf32> to vector<8x1xf32>
    %124 = vector.broadcast %123 : vector<8x1xf32> to vector<8x128xf32>
    %125 = vector.shape_cast %120 : vector<8x1xf32> to vector<8x1xf32>
    %126 = vector.broadcast %125 : vector<8x1xf32> to vector<8x128xf32>
    %127 = arith.select %122, %124, %126 : vector<8x128xi1>, vector<8x128xf32>
    %128 = arith.mulf %104, %127 : vector<8x128xf32>
    %cst_50 = arith.constant 1.250000e-01 : f32
    %129 = vector.broadcast %cst_50 : f32 to vector<8x128xf32>
    %130 = arith.mulf %128, %129 : vector<8x128xf32>
    %cst_51 = arith.constant dense<0.000000e+00> : vector<128xf32>
    %131 = vector.multi_reduction <add>, %130, %cst_51 [0] : vector<8x128xf32> to vector<128xf32>
    %132 = vector.shape_cast %131 : vector<128xf32> to vector<1x128xf32>
    %133 = tpu.reciprocal %132 {approx = true} : vector<1x128xf32> -> vector<1x128xf32>
    %134 = vector.broadcast %133 : vector<1x128xf32> to vector<8x128xf32>
    %135 = arith.mulf %130, %134 : vector<8x128xf32>
    %cst_52 = arith.constant 1.562500e-02 : f32
    %136 = vector.broadcast %cst_52 : f32 to vector<8x128xf32>
    %137 = arith.mulf %135, %136 : vector<8x128xf32>
    %cst_53 = arith.constant 0.000000e+00 : f32
    %138 = vector.shape_cast %50 : vector<1x128xi1> to vector<1x128xi1>
    %139 = vector.broadcast %138 : vector<1x128xi1> to vector<8x128xi1>
    %140 = vector.broadcast %cst_53 : f32 to vector<8x128xf32>
    %141 = arith.select %139, %137, %140 : vector<8x128xi1>, vector<8x128xf32>
    %cst_54 = arith.constant dense<0.000000e+00> : vector<8xf32>
    %142 = vector.multi_reduction <add>, %141, %cst_54 [1] : vector<8x128xf32> to vector<8xf32>
    %143 = vector.shape_cast %142 : vector<8xf32> to vector<8x1xf32>
    %cst_55 = arith.constant 1.000000e+00 : f32
    %144 = vector.broadcast %cst_55 : f32 to vector<8x1xf32>
    %145 = arith.divf %144, %143 : vector<8x1xf32>
    %cst_56 = arith.constant 0.000000e+00 : f32
    %146 = vector.shape_cast %55 : vector<1x128xi1> to vector<1x128xi1>
    %147 = vector.broadcast %146 : vector<1x128xi1> to vector<8x128xi1>
    %148 = vector.broadcast %cst_56 : f32 to vector<8x128xf32>
    %149 = arith.select %147, %137, %148 : vector<8x128xi1>, vector<8x128xf32>
    %cst_57 = arith.constant dense<0.000000e+00> : vector<8xf32>
    %150 = vector.multi_reduction <add>, %149, %cst_57 [1] : vector<8x128xf32> to vector<8xf32>
    %151 = vector.shape_cast %150 : vector<8xf32> to vector<8x1xf32>
    %cst_58 = arith.constant 1.000000e+00 : f32
    %152 = vector.broadcast %cst_58 : f32 to vector<8x1xf32>
    %153 = arith.divf %152, %151 : vector<8x1xf32>
    %154 = vector.shape_cast %50 : vector<1x128xi1> to vector<1x128xi1>
    %155 = vector.broadcast %154 : vector<1x128xi1> to vector<8x128xi1>
    %156 = vector.shape_cast %145 : vector<8x1xf32> to vector<8x1xf32>
    %157 = vector.broadcast %156 : vector<8x1xf32> to vector<8x128xf32>
    %158 = vector.shape_cast %153 : vector<8x1xf32> to vector<8x1xf32>
    %159 = vector.broadcast %158 : vector<8x1xf32> to vector<8x128xf32>
    %160 = arith.select %155, %157, %159 : vector<8x128xi1>, vector<8x128xf32>
    %161 = arith.mulf %137, %160 : vector<8x128xf32>
    %cst_59 = arith.constant 1.250000e-01 : f32
    %162 = vector.broadcast %cst_59 : f32 to vector<8x128xf32>
    %163 = arith.mulf %161, %162 : vector<8x128xf32>
    %cst_60 = arith.constant dense<0.000000e+00> : vector<128xf32>
    %164 = vector.multi_reduction <add>, %163, %cst_60 [0] : vector<8x128xf32> to vector<128xf32>
    %165 = vector.shape_cast %164 : vector<128xf32> to vector<1x128xf32>
    %166 = tpu.reciprocal %165 {approx = true} : vector<1x128xf32> -> vector<1x128xf32>
    %167 = vector.broadcast %166 : vector<1x128xf32> to vector<8x128xf32>
    %168 = arith.mulf %163, %167 : vector<8x128xf32>
    %cst_61 = arith.constant 1.562500e-02 : f32
    %169 = vector.broadcast %cst_61 : f32 to vector<8x128xf32>
    %170 = arith.mulf %168, %169 : vector<8x128xf32>
    %cst_62 = arith.constant 0.000000e+00 : f32
    %171 = vector.shape_cast %50 : vector<1x128xi1> to vector<1x128xi1>
    %172 = vector.broadcast %171 : vector<1x128xi1> to vector<8x128xi1>
    %173 = vector.broadcast %cst_62 : f32 to vector<8x128xf32>
    %174 = arith.select %172, %170, %173 : vector<8x128xi1>, vector<8x128xf32>
    %cst_63 = arith.constant dense<0.000000e+00> : vector<8xf32>
    %175 = vector.multi_reduction <add>, %174, %cst_63 [1] : vector<8x128xf32> to vector<8xf32>
    %176 = vector.shape_cast %175 : vector<8xf32> to vector<8x1xf32>
    %cst_64 = arith.constant 1.000000e+00 : f32
    %177 = vector.broadcast %cst_64 : f32 to vector<8x1xf32>
    %178 = arith.divf %177, %176 : vector<8x1xf32>
    %cst_65 = arith.constant 0.000000e+00 : f32
    %179 = vector.shape_cast %55 : vector<1x128xi1> to vector<1x128xi1>
    %180 = vector.broadcast %179 : vector<1x128xi1> to vector<8x128xi1>
    %181 = vector.broadcast %cst_65 : f32 to vector<8x128xf32>
    %182 = arith.select %180, %170, %181 : vector<8x128xi1>, vector<8x128xf32>
    %cst_66 = arith.constant dense<0.000000e+00> : vector<8xf32>
    %183 = vector.multi_reduction <add>, %182, %cst_66 [1] : vector<8x128xf32> to vector<8xf32>
    %184 = vector.shape_cast %183 : vector<8xf32> to vector<8x1xf32>
    %cst_67 = arith.constant 1.000000e+00 : f32
    %185 = vector.broadcast %cst_67 : f32 to vector<8x1xf32>
    %186 = arith.divf %185, %184 : vector<8x1xf32>
    %187 = vector.shape_cast %50 : vector<1x128xi1> to vector<1x128xi1>
    %188 = vector.broadcast %187 : vector<1x128xi1> to vector<8x128xi1>
    %189 = vector.shape_cast %178 : vector<8x1xf32> to vector<8x1xf32>
    %190 = vector.broadcast %189 : vector<8x1xf32> to vector<8x128xf32>
    %191 = vector.shape_cast %186 : vector<8x1xf32> to vector<8x1xf32>
    %192 = vector.broadcast %191 : vector<8x1xf32> to vector<8x128xf32>
    %193 = arith.select %188, %190, %192 : vector<8x128xi1>, vector<8x128xf32>
    %194 = arith.mulf %170, %193 : vector<8x128xf32>
    %cst_68 = arith.constant 1.250000e-01 : f32
    %195 = vector.broadcast %cst_68 : f32 to vector<8x128xf32>
    %196 = arith.mulf %194, %195 : vector<8x128xf32>
    %cst_69 = arith.constant dense<0.000000e+00> : vector<128xf32>
    %197 = vector.multi_reduction <add>, %196, %cst_69 [0] : vector<8x128xf32> to vector<128xf32>
    %198 = vector.shape_cast %197 : vector<128xf32> to vector<1x128xf32>
    %cst_70 = arith.constant 1.000000e+00 : f32
    %199 = vector.broadcast %cst_70 : f32 to vector<1x128xf32>
    %200 = arith.divf %199, %198 : vector<1x128xf32>
    %201 = vector.broadcast %200 : vector<1x128xf32> to vector<8x128xf32>
    %202 = arith.mulf %196, %201 : vector<8x128xf32>
    %cst_71 = arith.constant 1.562500e-02 : f32
    %203 = vector.broadcast %cst_71 : f32 to vector<8x128xf32>
    %204 = arith.mulf %202, %203 : vector<8x128xf32>
    %cst_72 = arith.constant 6.400000e+01 : f32
    %205 = vector.broadcast %cst_72 : f32 to vector<8x128xf32>
    %206 = arith.mulf %204, %205 : vector<8x128xf32>
    %cst_73 = arith.constant dense<0xFF800000> : vector<128xf32>
    %207 = vector.multi_reduction <maximumf>, %206, %cst_73 [0] : vector<8x128xf32> to vector<128xf32>
    %208 = vector.shape_cast %207 : vector<128xf32> to vector<1x128xf32>
    %209 = vector.broadcast %208 : vector<1x128xf32> to vector<8x128xf32>
    %210 = arith.cmpf oge, %206, %209 : vector<8x128xf32>
    %c8_i32 = arith.constant 8 : i32
    %211 = vector.broadcast %c8_i32 : i32 to vector<8x128xi32>
    %212 = arith.select %210, %44, %211 : vector<8x128xi1>, vector<8x128xi32>
    %cst_74 = arith.constant dense<2147483647> : vector<128xi32>
    %213 = vector.multi_reduction <minsi>, %212, %cst_74 [0] : vector<8x128xi32> to vector<128xi32>
    %214 = vector.shape_cast %213 : vector<128xi32> to vector<1x128xi32>
    %215 = vector.broadcast %214 : vector<1x128xi32> to vector<8x128xi32>
    %216 = arith.cmpi eq, %44, %215 : vector<8x128xi32>
    %217 = vector.broadcast %50 : vector<1x128xi1> to vector<8x128xi1>
    %218 = arith.andi %217, %216 : vector<8x128xi1>
    %cst_75 = arith.constant 1.000000e+00 : f32
    %cst_76 = arith.constant 0.000000e+00 : f32
    %219 = vector.broadcast %cst_75 : f32 to vector<8x128xf32>
    %220 = vector.broadcast %cst_76 : f32 to vector<8x128xf32>
    %221 = arith.select %218, %219, %220 : vector<8x128xi1>, vector<8x128xf32>
    %222 = vector.broadcast %55 : vector<1x128xi1> to vector<8x128xi1>
    %223 = arith.andi %222, %216 : vector<8x128xi1>
    %cst_77 = arith.constant 1.000000e+00 : f32
    %cst_78 = arith.constant 0.000000e+00 : f32
    %224 = vector.broadcast %cst_77 : f32 to vector<8x128xf32>
    %225 = vector.broadcast %cst_78 : f32 to vector<8x128xf32>
    %226 = arith.select %223, %224, %225 : vector<8x128xi1>, vector<8x128xf32>
    %227 = tpu.concatenate %221, %226 in 0 : vector<8x128xf32>, vector<8x128xf32> -> vector<16x128xf32>
    %cst_79 = arith.constant dense<0.000000e+00> : vector<16x32xf32>
    %228 = tpu.matmul %227, %12, %cst_79 {dimension_numbers = #tpu.dot_dimension_numbers<[1], [1], [0], [0], [0, 0, 1, 0], [], []>} : vector<16x128xf32>, vector<32x128xf32>, vector<16x32xf32> -> vector<16x32xf32>
    %cst_80 = arith.constant dense<0.000000e+00> : vector<16xf32>
    %229 = vector.multi_reduction <add>, %227, %cst_80 [1] : vector<16x128xf32> to vector<16xf32>
    %230 = vector.shape_cast %229 : vector<16xf32> to vector<16x1xf32>
    %cst_81 = arith.constant 0.000000e+00 : f32
    %231 = vector.broadcast %cst_81 : f32 to vector<16x1xf32>
    %232 = arith.cmpf ogt, %230, %231 : vector<16x1xf32>
    %cst_82 = arith.constant 1.000000e+00 : f32
    %233 = vector.broadcast %cst_82 : f32 to vector<16x1xf32>
    %234 = arith.select %232, %230, %233 : vector<16x1xi1>, vector<16x1xf32>
    %cst_83 = arith.constant 0.000000e+00 : f32
    %235 = vector.broadcast %cst_83 : f32 to vector<16x1xf32>
    %236 = arith.cmpf ogt, %230, %235 : vector<16x1xf32>
    %237 = tpu.reciprocal %234 {approx = true} : vector<16x1xf32> -> vector<16x1xf32>
    %238 = vector.broadcast %237 : vector<16x1xf32> to vector<16x32xf32>
    %239 = arith.mulf %228, %238 : vector<16x32xf32>
    %cst_84 = arith.constant 0.000000e+00 : f32
    %240 = vector.shape_cast %236 : vector<16x1xi1> to vector<16x1xi1>
    %241 = vector.broadcast %240 : vector<16x1xi1> to vector<16x32xi1>
    %242 = vector.broadcast %cst_84 : f32 to vector<16x32xf32>
    %243 = arith.select %241, %239, %242 : vector<16x32xi1>, vector<16x32xf32>
    %244 = arith.mulf %243, %243 : vector<16x32xf32>
    %cst_85 = arith.constant dense<0.000000e+00> : vector<16xf32>
    %245 = vector.multi_reduction <add>, %244, %cst_85 [1] : vector<16x32xf32> to vector<16xf32>
    %246 = vector.shape_cast %245 : vector<16xf32> to vector<16x1xf32>
    %cst_86 = arith.constant 9.99999996E-13 : f32
    %247 = vector.broadcast %cst_86 : f32 to vector<16x1xf32>
    %248 = arith.addf %246, %247 : vector<16x1xf32>
    %249 = math.rsqrt %248 : vector<16x1xf32>
    %250 = vector.broadcast %249 : vector<16x1xf32> to vector<16x32xf32>
    %251 = arith.mulf %243, %250 : vector<16x32xf32>
    %cst_87 = arith.constant dense<0.000000e+00> : vector<16x128xf32>
    %252 = tpu.matmul %251, %34, %cst_87 {dimension_numbers = #tpu.dot_dimension_numbers<[1], [0], [0], [1], [0, 0, 1, 1], [], []>} : vector<16x32xf32>, vector<32x128xf32>, vector<16x128xf32> -> vector<16x128xf32>
    %253 = vector.extract_strided_slice %252 {offsets = [8, 0], sizes = [8, 128], strides = [1, 1]} : vector<16x128xf32> to vector<8x128xf32>
    %254 = vector.extract_strided_slice %252 {offsets = [0, 0], sizes = [8, 128], strides = [1, 1]} : vector<16x128xf32> to vector<8x128xf32>
    %255 = vector.shape_cast %50 : vector<1x128xi1> to vector<1x128xi1>
    %256 = vector.broadcast %255 : vector<1x128xi1> to vector<8x128xi1>
    %257 = arith.select %256, %254, %253 : vector<8x128xi1>, vector<8x128xf32>
    %cst_88 = arith.constant dense<0xFF800000> : vector<128xf32>
    %258 = vector.multi_reduction <maximumf>, %257, %cst_88 [0] : vector<8x128xf32> to vector<128xf32>
    %259 = vector.shape_cast %258 : vector<128xf32> to vector<1x128xf32>
    %260 = vector.broadcast %259 : vector<1x128xf32> to vector<8x128xf32>
    %261 = arith.subf %257, %260 : vector<8x128xf32>
    %262 = math.exp %261 : vector<8x128xf32>
    %cst_89 = arith.constant dense<0.000000e+00> : vector<128xf32>
    %263 = vector.multi_reduction <add>, %262, %cst_89 [0] : vector<8x128xf32> to vector<128xf32>
    %264 = vector.shape_cast %263 : vector<128xf32> to vector<1x128xf32>
    %cst_90 = arith.constant 1.000000e+00 : f32
    %265 = vector.broadcast %cst_90 : f32 to vector<1x128xf32>
    %266 = arith.divf %265, %264 : vector<1x128xf32>
    %267 = vector.broadcast %266 : vector<1x128xf32> to vector<8x128xf32>
    %268 = arith.mulf %262, %267 : vector<8x128xf32>
    %cst_91 = arith.constant 2.000000e+01 : f32
    %269 = vector.broadcast %cst_91 : f32 to vector<8x128xf32>
    %270 = arith.mulf %268, %269 : vector<8x128xf32>
    %271 = math.exp %270 : vector<8x128xf32>
    %cst_92 = arith.constant 0.000000e+00 : f32
    %272 = vector.shape_cast %50 : vector<1x128xi1> to vector<1x128xi1>
    %273 = vector.broadcast %272 : vector<1x128xi1> to vector<8x128xi1>
    %274 = vector.broadcast %cst_92 : f32 to vector<8x128xf32>
    %275 = arith.select %273, %271, %274 : vector<8x128xi1>, vector<8x128xf32>
    %276 = vector.shape_cast %275 : vector<8x128xf32> to vector<1x8x128xf32>
    %cst_93 = arith.constant dense<0.000000e+00> : vector<1xf32>
    %277 = vector.multi_reduction <add>, %276, %cst_93 [1, 2] : vector<1x8x128xf32> to vector<1xf32>
    %278 = vector.shape_cast %277 : vector<1xf32> to vector<1x1x1xf32>
    %279 = vector.extract %278[0, 0, 0] : f32 from vector<1x1x1xf32>
    %280 = vector.broadcast %279 : f32 to vector<1x1xf32>
    %cst_94 = arith.constant 1.000000e+00 : f32
    %281 = vector.broadcast %cst_94 : f32 to vector<1x1xf32>
    %282 = arith.divf %281, %280 : vector<1x1xf32>
    %cst_95 = arith.constant 0.000000e+00 : f32
    %283 = vector.shape_cast %55 : vector<1x128xi1> to vector<1x128xi1>
    %284 = vector.broadcast %283 : vector<1x128xi1> to vector<8x128xi1>
    %285 = vector.broadcast %cst_95 : f32 to vector<8x128xf32>
    %286 = arith.select %284, %271, %285 : vector<8x128xi1>, vector<8x128xf32>
    %287 = vector.shape_cast %286 : vector<8x128xf32> to vector<1x8x128xf32>
    %cst_96 = arith.constant dense<0.000000e+00> : vector<1xf32>
    %288 = vector.multi_reduction <add>, %287, %cst_96 [1, 2] : vector<1x8x128xf32> to vector<1xf32>
    %289 = vector.shape_cast %288 : vector<1xf32> to vector<1x1x1xf32>
    %290 = vector.extract %289[0, 0, 0] : f32 from vector<1x1x1xf32>
    %291 = vector.broadcast %290 : f32 to vector<1x1xf32>
    %cst_97 = arith.constant 1.000000e+00 : f32
    %292 = vector.broadcast %cst_97 : f32 to vector<1x1xf32>
    %293 = arith.divf %292, %291 : vector<1x1xf32>
    %294 = vector.shape_cast %282 : vector<1x1xf32> to vector<1x1xf32>
    %295 = vector.broadcast %294 : vector<1x1xf32> to vector<1x128xf32>
    %296 = vector.shape_cast %293 : vector<1x1xf32> to vector<1x1xf32>
    %297 = vector.broadcast %296 : vector<1x1xf32> to vector<1x128xf32>
    %298 = arith.select %50, %295, %297 : vector<1x128xi1>, vector<1x128xf32>
    %299 = vector.broadcast %298 : vector<1x128xf32> to vector<8x128xf32>
    %300 = arith.mulf %271, %299 : vector<8x128xf32>
    %cst_98 = arith.constant 0.000000e+00 : f32
    %301 = vector.shape_cast %50 : vector<1x128xi1> to vector<1x128xi1>
    %302 = vector.broadcast %301 : vector<1x128xi1> to vector<8x128xi1>
    %303 = vector.broadcast %cst_98 : f32 to vector<8x128xf32>
    %304 = arith.select %302, %300, %303 : vector<8x128xi1>, vector<8x128xf32>
    %cst_99 = arith.constant dense<0.000000e+00> : vector<8xf32>
    %305 = vector.multi_reduction <add>, %304, %cst_99 [1] : vector<8x128xf32> to vector<8xf32>
    %306 = vector.shape_cast %305 : vector<8xf32> to vector<8x1xf32>
    %cst_100 = arith.constant 1.000000e+00 : f32
    %307 = vector.broadcast %cst_100 : f32 to vector<8x1xf32>
    %308 = arith.divf %307, %306 : vector<8x1xf32>
    %cst_101 = arith.constant 0.000000e+00 : f32
    %309 = vector.shape_cast %55 : vector<1x128xi1> to vector<1x128xi1>
    %310 = vector.broadcast %309 : vector<1x128xi1> to vector<8x128xi1>
    %311 = vector.broadcast %cst_101 : f32 to vector<8x128xf32>
    %312 = arith.select %310, %300, %311 : vector<8x128xi1>, vector<8x128xf32>
    %cst_102 = arith.constant dense<0.000000e+00> : vector<8xf32>
    %313 = vector.multi_reduction <add>, %312, %cst_102 [1] : vector<8x128xf32> to vector<8xf32>
    %314 = vector.shape_cast %313 : vector<8xf32> to vector<8x1xf32>
    %cst_103 = arith.constant 1.000000e+00 : f32
    %315 = vector.broadcast %cst_103 : f32 to vector<8x1xf32>
    %316 = arith.divf %315, %314 : vector<8x1xf32>
    %317 = vector.shape_cast %50 : vector<1x128xi1> to vector<1x128xi1>
    %318 = vector.broadcast %317 : vector<1x128xi1> to vector<8x128xi1>
    %319 = vector.shape_cast %308 : vector<8x1xf32> to vector<8x1xf32>
    %320 = vector.broadcast %319 : vector<8x1xf32> to vector<8x128xf32>
    %321 = vector.shape_cast %316 : vector<8x1xf32> to vector<8x1xf32>
    %322 = vector.broadcast %321 : vector<8x1xf32> to vector<8x128xf32>
    %323 = arith.select %318, %320, %322 : vector<8x128xi1>, vector<8x128xf32>
    %324 = arith.mulf %300, %323 : vector<8x128xf32>
    %cst_104 = arith.constant 1.250000e-01 : f32
    %325 = vector.broadcast %cst_104 : f32 to vector<8x128xf32>
    %326 = arith.mulf %324, %325 : vector<8x128xf32>
    %cst_105 = arith.constant dense<0.000000e+00> : vector<128xf32>
    %327 = vector.multi_reduction <add>, %326, %cst_105 [0] : vector<8x128xf32> to vector<128xf32>
    %328 = vector.shape_cast %327 : vector<128xf32> to vector<1x128xf32>
    %329 = tpu.reciprocal %328 {approx = true} : vector<1x128xf32> -> vector<1x128xf32>
    %330 = vector.broadcast %329 : vector<1x128xf32> to vector<8x128xf32>
    %331 = arith.mulf %326, %330 : vector<8x128xf32>
    %cst_106 = arith.constant 1.562500e-02 : f32
    %332 = vector.broadcast %cst_106 : f32 to vector<8x128xf32>
    %333 = arith.mulf %331, %332 : vector<8x128xf32>
    %cst_107 = arith.constant 0.000000e+00 : f32
    %334 = vector.shape_cast %50 : vector<1x128xi1> to vector<1x128xi1>
    %335 = vector.broadcast %334 : vector<1x128xi1> to vector<8x128xi1>
    %336 = vector.broadcast %cst_107 : f32 to vector<8x128xf32>
    %337 = arith.select %335, %333, %336 : vector<8x128xi1>, vector<8x128xf32>
    %cst_108 = arith.constant dense<0.000000e+00> : vector<8xf32>
    %338 = vector.multi_reduction <add>, %337, %cst_108 [1] : vector<8x128xf32> to vector<8xf32>
    %339 = vector.shape_cast %338 : vector<8xf32> to vector<8x1xf32>
    %cst_109 = arith.constant 1.000000e+00 : f32
    %340 = vector.broadcast %cst_109 : f32 to vector<8x1xf32>
    %341 = arith.divf %340, %339 : vector<8x1xf32>
    %cst_110 = arith.constant 0.000000e+00 : f32
    %342 = vector.shape_cast %55 : vector<1x128xi1> to vector<1x128xi1>
    %343 = vector.broadcast %342 : vector<1x128xi1> to vector<8x128xi1>
    %344 = vector.broadcast %cst_110 : f32 to vector<8x128xf32>
    %345 = arith.select %343, %333, %344 : vector<8x128xi1>, vector<8x128xf32>
    %cst_111 = arith.constant dense<0.000000e+00> : vector<8xf32>
    %346 = vector.multi_reduction <add>, %345, %cst_111 [1] : vector<8x128xf32> to vector<8xf32>
    %347 = vector.shape_cast %346 : vector<8xf32> to vector<8x1xf32>
    %cst_112 = arith.constant 1.000000e+00 : f32
    %348 = vector.broadcast %cst_112 : f32 to vector<8x1xf32>
    %349 = arith.divf %348, %347 : vector<8x1xf32>
    %350 = vector.shape_cast %50 : vector<1x128xi1> to vector<1x128xi1>
    %351 = vector.broadcast %350 : vector<1x128xi1> to vector<8x128xi1>
    %352 = vector.shape_cast %341 : vector<8x1xf32> to vector<8x1xf32>
    %353 = vector.broadcast %352 : vector<8x1xf32> to vector<8x128xf32>
    %354 = vector.shape_cast %349 : vector<8x1xf32> to vector<8x1xf32>
    %355 = vector.broadcast %354 : vector<8x1xf32> to vector<8x128xf32>
    %356 = arith.select %351, %353, %355 : vector<8x128xi1>, vector<8x128xf32>
    %357 = arith.mulf %333, %356 : vector<8x128xf32>
    %cst_113 = arith.constant 1.250000e-01 : f32
    %358 = vector.broadcast %cst_113 : f32 to vector<8x128xf32>
    %359 = arith.mulf %357, %358 : vector<8x128xf32>
    %cst_114 = arith.constant dense<0.000000e+00> : vector<128xf32>
    %360 = vector.multi_reduction <add>, %359, %cst_114 [0] : vector<8x128xf32> to vector<128xf32>
    %361 = vector.shape_cast %360 : vector<128xf32> to vector<1x128xf32>
    %362 = tpu.reciprocal %361 {approx = true} : vector<1x128xf32> -> vector<1x128xf32>
    %363 = vector.broadcast %362 : vector<1x128xf32> to vector<8x128xf32>
    %364 = arith.mulf %359, %363 : vector<8x128xf32>
    %cst_115 = arith.constant 1.562500e-02 : f32
    %365 = vector.broadcast %cst_115 : f32 to vector<8x128xf32>
    %366 = arith.mulf %364, %365 : vector<8x128xf32>
    %cst_116 = arith.constant 0.000000e+00 : f32
    %367 = vector.shape_cast %50 : vector<1x128xi1> to vector<1x128xi1>
    %368 = vector.broadcast %367 : vector<1x128xi1> to vector<8x128xi1>
    %369 = vector.broadcast %cst_116 : f32 to vector<8x128xf32>
    %370 = arith.select %368, %366, %369 : vector<8x128xi1>, vector<8x128xf32>
    %cst_117 = arith.constant dense<0.000000e+00> : vector<8xf32>
    %371 = vector.multi_reduction <add>, %370, %cst_117 [1] : vector<8x128xf32> to vector<8xf32>
    %372 = vector.shape_cast %371 : vector<8xf32> to vector<8x1xf32>
    %cst_118 = arith.constant 1.000000e+00 : f32
    %373 = vector.broadcast %cst_118 : f32 to vector<8x1xf32>
    %374 = arith.divf %373, %372 : vector<8x1xf32>
    %cst_119 = arith.constant 0.000000e+00 : f32
    %375 = vector.shape_cast %55 : vector<1x128xi1> to vector<1x128xi1>
    %376 = vector.broadcast %375 : vector<1x128xi1> to vector<8x128xi1>
    %377 = vector.broadcast %cst_119 : f32 to vector<8x128xf32>
    %378 = arith.select %376, %366, %377 : vector<8x128xi1>, vector<8x128xf32>
    %cst_120 = arith.constant dense<0.000000e+00> : vector<8xf32>
    %379 = vector.multi_reduction <add>, %378, %cst_120 [1] : vector<8x128xf32> to vector<8xf32>
    %380 = vector.shape_cast %379 : vector<8xf32> to vector<8x1xf32>
    %cst_121 = arith.constant 1.000000e+00 : f32
    %381 = vector.broadcast %cst_121 : f32 to vector<8x1xf32>
    %382 = arith.divf %381, %380 : vector<8x1xf32>
    %383 = vector.shape_cast %50 : vector<1x128xi1> to vector<1x128xi1>
    %384 = vector.broadcast %383 : vector<1x128xi1> to vector<8x128xi1>
    %385 = vector.shape_cast %374 : vector<8x1xf32> to vector<8x1xf32>
    %386 = vector.broadcast %385 : vector<8x1xf32> to vector<8x128xf32>
    %387 = vector.shape_cast %382 : vector<8x1xf32> to vector<8x1xf32>
    %388 = vector.broadcast %387 : vector<8x1xf32> to vector<8x128xf32>
    %389 = arith.select %384, %386, %388 : vector<8x128xi1>, vector<8x128xf32>
    %390 = arith.mulf %366, %389 : vector<8x128xf32>
    %cst_122 = arith.constant 1.250000e-01 : f32
    %391 = vector.broadcast %cst_122 : f32 to vector<8x128xf32>
    %392 = arith.mulf %390, %391 : vector<8x128xf32>
    %cst_123 = arith.constant dense<0.000000e+00> : vector<128xf32>
    %393 = vector.multi_reduction <add>, %392, %cst_123 [0] : vector<8x128xf32> to vector<128xf32>
    %394 = vector.shape_cast %393 : vector<128xf32> to vector<1x128xf32>
    %cst_124 = arith.constant 1.000000e+00 : f32
    %395 = vector.broadcast %cst_124 : f32 to vector<1x128xf32>
    %396 = arith.divf %395, %394 : vector<1x128xf32>
    %397 = vector.broadcast %396 : vector<1x128xf32> to vector<8x128xf32>
    %398 = arith.mulf %392, %397 : vector<8x128xf32>
    %cst_125 = arith.constant 1.562500e-02 : f32
    %399 = vector.broadcast %cst_125 : f32 to vector<8x128xf32>
    %400 = arith.mulf %398, %399 : vector<8x128xf32>
    %cst_126 = arith.constant 6.400000e+01 : f32
    %401 = vector.broadcast %cst_126 : f32 to vector<8x128xf32>
    %402 = arith.mulf %400, %401 : vector<8x128xf32>
    %cst_127 = arith.constant dense<0xFF800000> : vector<128xf32>
    %403 = vector.multi_reduction <maximumf>, %402, %cst_127 [0] : vector<8x128xf32> to vector<128xf32>
    %404 = vector.shape_cast %403 : vector<128xf32> to vector<1x128xf32>
    %405 = vector.broadcast %404 : vector<1x128xf32> to vector<8x128xf32>
    %406 = arith.cmpf oge, %402, %405 : vector<8x128xf32>
    %c8_i32_128 = arith.constant 8 : i32
    %407 = vector.broadcast %c8_i32_128 : i32 to vector<8x128xi32>
    %408 = arith.select %406, %44, %407 : vector<8x128xi1>, vector<8x128xi32>
    %cst_129 = arith.constant dense<2147483647> : vector<128xi32>
    %409 = vector.multi_reduction <minsi>, %408, %cst_129 [0] : vector<8x128xi32> to vector<128xi32>
    %410 = vector.shape_cast %409 : vector<128xi32> to vector<1x128xi32>
    %411 = vector.broadcast %410 : vector<1x128xi32> to vector<8x128xi32>
    %412 = arith.cmpi eq, %44, %411 : vector<8x128xi32>
    %413 = vector.broadcast %50 : vector<1x128xi1> to vector<8x128xi1>
    %414 = arith.andi %413, %412 : vector<8x128xi1>
    %cst_130 = arith.constant 1.000000e+00 : f32
    %cst_131 = arith.constant 0.000000e+00 : f32
    %415 = vector.broadcast %cst_130 : f32 to vector<8x128xf32>
    %416 = vector.broadcast %cst_131 : f32 to vector<8x128xf32>
    %417 = arith.select %414, %415, %416 : vector<8x128xi1>, vector<8x128xf32>
    %418 = vector.broadcast %55 : vector<1x128xi1> to vector<8x128xi1>
    %419 = arith.andi %418, %412 : vector<8x128xi1>
    %cst_132 = arith.constant 1.000000e+00 : f32
    %cst_133 = arith.constant 0.000000e+00 : f32
    %420 = vector.broadcast %cst_132 : f32 to vector<8x128xf32>
    %421 = vector.broadcast %cst_133 : f32 to vector<8x128xf32>
    %422 = arith.select %419, %420, %421 : vector<8x128xi1>, vector<8x128xf32>
    %423 = tpu.concatenate %417, %422 in 0 : vector<8x128xf32>, vector<8x128xf32> -> vector<16x128xf32>
    %cst_134 = arith.constant dense<0.000000e+00> : vector<16x32xf32>
    %424 = tpu.matmul %423, %12, %cst_134 {dimension_numbers = #tpu.dot_dimension_numbers<[1], [1], [0], [0], [0, 0, 1, 0], [], []>} : vector<16x128xf32>, vector<32x128xf32>, vector<16x32xf32> -> vector<16x32xf32>
    %cst_135 = arith.constant dense<0.000000e+00> : vector<16xf32>
    %425 = vector.multi_reduction <add>, %423, %cst_135 [1] : vector<16x128xf32> to vector<16xf32>
    %426 = vector.shape_cast %425 : vector<16xf32> to vector<16x1xf32>
    %cst_136 = arith.constant 0.000000e+00 : f32
    %427 = vector.broadcast %cst_136 : f32 to vector<16x1xf32>
    %428 = arith.cmpf ogt, %426, %427 : vector<16x1xf32>
    %cst_137 = arith.constant 1.000000e+00 : f32
    %429 = vector.broadcast %cst_137 : f32 to vector<16x1xf32>
    %430 = arith.select %428, %426, %429 : vector<16x1xi1>, vector<16x1xf32>
    %cst_138 = arith.constant 0.000000e+00 : f32
    %431 = vector.broadcast %cst_138 : f32 to vector<16x1xf32>
    %432 = arith.cmpf ogt, %426, %431 : vector<16x1xf32>
    %433 = tpu.reciprocal %430 {approx = true} : vector<16x1xf32> -> vector<16x1xf32>
    %434 = vector.broadcast %433 : vector<16x1xf32> to vector<16x32xf32>
    %435 = arith.mulf %424, %434 : vector<16x32xf32>
    %cst_139 = arith.constant 0.000000e+00 : f32
    %436 = vector.shape_cast %432 : vector<16x1xi1> to vector<16x1xi1>
    %437 = vector.broadcast %436 : vector<16x1xi1> to vector<16x32xi1>
    %438 = vector.broadcast %cst_139 : f32 to vector<16x32xf32>
    %439 = arith.select %437, %435, %438 : vector<16x32xi1>, vector<16x32xf32>
    %440 = arith.mulf %439, %439 : vector<16x32xf32>
    %cst_140 = arith.constant dense<0.000000e+00> : vector<16xf32>
    %441 = vector.multi_reduction <add>, %440, %cst_140 [1] : vector<16x32xf32> to vector<16xf32>
    %442 = vector.shape_cast %441 : vector<16xf32> to vector<16x1xf32>
    %cst_141 = arith.constant 9.99999996E-13 : f32
    %443 = vector.broadcast %cst_141 : f32 to vector<16x1xf32>
    %444 = arith.addf %442, %443 : vector<16x1xf32>
    %445 = math.rsqrt %444 : vector<16x1xf32>
    %446 = vector.broadcast %445 : vector<16x1xf32> to vector<16x32xf32>
    %447 = arith.mulf %439, %446 : vector<16x32xf32>
    %cst_142 = arith.constant dense<0.000000e+00> : vector<16x128xf32>
    %448 = tpu.matmul %447, %34, %cst_142 {dimension_numbers = #tpu.dot_dimension_numbers<[1], [0], [0], [1], [0, 0, 1, 1], [], []>} : vector<16x32xf32>, vector<32x128xf32>, vector<16x128xf32> -> vector<16x128xf32>
    %449 = vector.extract_strided_slice %448 {offsets = [8, 0], sizes = [8, 128], strides = [1, 1]} : vector<16x128xf32> to vector<8x128xf32>
    %450 = vector.extract_strided_slice %448 {offsets = [0, 0], sizes = [8, 128], strides = [1, 1]} : vector<16x128xf32> to vector<8x128xf32>
    %451 = vector.shape_cast %50 : vector<1x128xi1> to vector<1x128xi1>
    %452 = vector.broadcast %451 : vector<1x128xi1> to vector<8x128xi1>
    %453 = arith.select %452, %450, %449 : vector<8x128xi1>, vector<8x128xf32>
    %cst_143 = arith.constant dense<0xFF800000> : vector<128xf32>
    %454 = vector.multi_reduction <maximumf>, %453, %cst_143 [0] : vector<8x128xf32> to vector<128xf32>
    %455 = vector.shape_cast %454 : vector<128xf32> to vector<1x128xf32>
    %456 = vector.broadcast %455 : vector<1x128xf32> to vector<8x128xf32>
    %457 = arith.subf %453, %456 : vector<8x128xf32>
    %458 = math.exp %457 : vector<8x128xf32>
    %cst_144 = arith.constant dense<0.000000e+00> : vector<128xf32>
    %459 = vector.multi_reduction <add>, %458, %cst_144 [0] : vector<8x128xf32> to vector<128xf32>
    %460 = vector.shape_cast %459 : vector<128xf32> to vector<1x128xf32>
    %cst_145 = arith.constant 1.000000e+00 : f32
    %461 = vector.broadcast %cst_145 : f32 to vector<1x128xf32>
    %462 = arith.divf %461, %460 : vector<1x128xf32>
    %463 = vector.broadcast %462 : vector<1x128xf32> to vector<8x128xf32>
    %464 = arith.mulf %458, %463 : vector<8x128xf32>
    %cst_146 = arith.constant 2.000000e+01 : f32
    %465 = vector.broadcast %cst_146 : f32 to vector<8x128xf32>
    %466 = arith.mulf %464, %465 : vector<8x128xf32>
    %467 = math.exp %466 : vector<8x128xf32>
    %cst_147 = arith.constant 0.000000e+00 : f32
    %468 = vector.shape_cast %50 : vector<1x128xi1> to vector<1x128xi1>
    %469 = vector.broadcast %468 : vector<1x128xi1> to vector<8x128xi1>
    %470 = vector.broadcast %cst_147 : f32 to vector<8x128xf32>
    %471 = arith.select %469, %467, %470 : vector<8x128xi1>, vector<8x128xf32>
    %472 = vector.shape_cast %471 : vector<8x128xf32> to vector<1x8x128xf32>
    %cst_148 = arith.constant dense<0.000000e+00> : vector<1xf32>
    %473 = vector.multi_reduction <add>, %472, %cst_148 [1, 2] : vector<1x8x128xf32> to vector<1xf32>
    %474 = vector.shape_cast %473 : vector<1xf32> to vector<1x1x1xf32>
    %475 = vector.extract %474[0, 0, 0] : f32 from vector<1x1x1xf32>
    %476 = vector.broadcast %475 : f32 to vector<1x1xf32>
    %cst_149 = arith.constant 1.000000e+00 : f32
    %477 = vector.broadcast %cst_149 : f32 to vector<1x1xf32>
    %478 = arith.divf %477, %476 : vector<1x1xf32>
    %cst_150 = arith.constant 0.000000e+00 : f32
    %479 = vector.shape_cast %55 : vector<1x128xi1> to vector<1x128xi1>
    %480 = vector.broadcast %479 : vector<1x128xi1> to vector<8x128xi1>
    %481 = vector.broadcast %cst_150 : f32 to vector<8x128xf32>
    %482 = arith.select %480, %467, %481 : vector<8x128xi1>, vector<8x128xf32>
    %483 = vector.shape_cast %482 : vector<8x128xf32> to vector<1x8x128xf32>
    %cst_151 = arith.constant dense<0.000000e+00> : vector<1xf32>
    %484 = vector.multi_reduction <add>, %483, %cst_151 [1, 2] : vector<1x8x128xf32> to vector<1xf32>
    %485 = vector.shape_cast %484 : vector<1xf32> to vector<1x1x1xf32>
    %486 = vector.extract %485[0, 0, 0] : f32 from vector<1x1x1xf32>
    %487 = vector.broadcast %486 : f32 to vector<1x1xf32>
    %cst_152 = arith.constant 1.000000e+00 : f32
    %488 = vector.broadcast %cst_152 : f32 to vector<1x1xf32>
    %489 = arith.divf %488, %487 : vector<1x1xf32>
    %490 = vector.shape_cast %478 : vector<1x1xf32> to vector<1x1xf32>
    %491 = vector.broadcast %490 : vector<1x1xf32> to vector<1x128xf32>
    %492 = vector.shape_cast %489 : vector<1x1xf32> to vector<1x1xf32>
    %493 = vector.broadcast %492 : vector<1x1xf32> to vector<1x128xf32>
    %494 = arith.select %50, %491, %493 : vector<1x128xi1>, vector<1x128xf32>
    %495 = vector.broadcast %494 : vector<1x128xf32> to vector<8x128xf32>
    %496 = arith.mulf %467, %495 : vector<8x128xf32>
    %cst_153 = arith.constant 0.000000e+00 : f32
    %497 = vector.shape_cast %50 : vector<1x128xi1> to vector<1x128xi1>
    %498 = vector.broadcast %497 : vector<1x128xi1> to vector<8x128xi1>
    %499 = vector.broadcast %cst_153 : f32 to vector<8x128xf32>
    %500 = arith.select %498, %496, %499 : vector<8x128xi1>, vector<8x128xf32>
    %cst_154 = arith.constant dense<0.000000e+00> : vector<8xf32>
    %501 = vector.multi_reduction <add>, %500, %cst_154 [1] : vector<8x128xf32> to vector<8xf32>
    %502 = vector.shape_cast %501 : vector<8xf32> to vector<8x1xf32>
    %cst_155 = arith.constant 1.000000e+00 : f32
    %503 = vector.broadcast %cst_155 : f32 to vector<8x1xf32>
    %504 = arith.divf %503, %502 : vector<8x1xf32>
    %cst_156 = arith.constant 0.000000e+00 : f32
    %505 = vector.shape_cast %55 : vector<1x128xi1> to vector<1x128xi1>
    %506 = vector.broadcast %505 : vector<1x128xi1> to vector<8x128xi1>
    %507 = vector.broadcast %cst_156 : f32 to vector<8x128xf32>
    %508 = arith.select %506, %496, %507 : vector<8x128xi1>, vector<8x128xf32>
    %cst_157 = arith.constant dense<0.000000e+00> : vector<8xf32>
    %509 = vector.multi_reduction <add>, %508, %cst_157 [1] : vector<8x128xf32> to vector<8xf32>
    %510 = vector.shape_cast %509 : vector<8xf32> to vector<8x1xf32>
    %cst_158 = arith.constant 1.000000e+00 : f32
    %511 = vector.broadcast %cst_158 : f32 to vector<8x1xf32>
    %512 = arith.divf %511, %510 : vector<8x1xf32>
    %513 = vector.shape_cast %50 : vector<1x128xi1> to vector<1x128xi1>
    %514 = vector.broadcast %513 : vector<1x128xi1> to vector<8x128xi1>
    %515 = vector.shape_cast %504 : vector<8x1xf32> to vector<8x1xf32>
    %516 = vector.broadcast %515 : vector<8x1xf32> to vector<8x128xf32>
    %517 = vector.shape_cast %512 : vector<8x1xf32> to vector<8x1xf32>
    %518 = vector.broadcast %517 : vector<8x1xf32> to vector<8x128xf32>
    %519 = arith.select %514, %516, %518 : vector<8x128xi1>, vector<8x128xf32>
    %520 = arith.mulf %496, %519 : vector<8x128xf32>
    %cst_159 = arith.constant 1.250000e-01 : f32
    %521 = vector.broadcast %cst_159 : f32 to vector<8x128xf32>
    %522 = arith.mulf %520, %521 : vector<8x128xf32>
    %cst_160 = arith.constant dense<0.000000e+00> : vector<128xf32>
    %523 = vector.multi_reduction <add>, %522, %cst_160 [0] : vector<8x128xf32> to vector<128xf32>
    %524 = vector.shape_cast %523 : vector<128xf32> to vector<1x128xf32>
    %525 = tpu.reciprocal %524 {approx = true} : vector<1x128xf32> -> vector<1x128xf32>
    %526 = vector.broadcast %525 : vector<1x128xf32> to vector<8x128xf32>
    %527 = arith.mulf %522, %526 : vector<8x128xf32>
    %cst_161 = arith.constant 1.562500e-02 : f32
    %528 = vector.broadcast %cst_161 : f32 to vector<8x128xf32>
    %529 = arith.mulf %527, %528 : vector<8x128xf32>
    %cst_162 = arith.constant 0.000000e+00 : f32
    %530 = vector.shape_cast %50 : vector<1x128xi1> to vector<1x128xi1>
    %531 = vector.broadcast %530 : vector<1x128xi1> to vector<8x128xi1>
    %532 = vector.broadcast %cst_162 : f32 to vector<8x128xf32>
    %533 = arith.select %531, %529, %532 : vector<8x128xi1>, vector<8x128xf32>
    %cst_163 = arith.constant dense<0.000000e+00> : vector<8xf32>
    %534 = vector.multi_reduction <add>, %533, %cst_163 [1] : vector<8x128xf32> to vector<8xf32>
    %535 = vector.shape_cast %534 : vector<8xf32> to vector<8x1xf32>
    %cst_164 = arith.constant 1.000000e+00 : f32
    %536 = vector.broadcast %cst_164 : f32 to vector<8x1xf32>
    %537 = arith.divf %536, %535 : vector<8x1xf32>
    %cst_165 = arith.constant 0.000000e+00 : f32
    %538 = vector.shape_cast %55 : vector<1x128xi1> to vector<1x128xi1>
    %539 = vector.broadcast %538 : vector<1x128xi1> to vector<8x128xi1>
    %540 = vector.broadcast %cst_165 : f32 to vector<8x128xf32>
    %541 = arith.select %539, %529, %540 : vector<8x128xi1>, vector<8x128xf32>
    %cst_166 = arith.constant dense<0.000000e+00> : vector<8xf32>
    %542 = vector.multi_reduction <add>, %541, %cst_166 [1] : vector<8x128xf32> to vector<8xf32>
    %543 = vector.shape_cast %542 : vector<8xf32> to vector<8x1xf32>
    %cst_167 = arith.constant 1.000000e+00 : f32
    %544 = vector.broadcast %cst_167 : f32 to vector<8x1xf32>
    %545 = arith.divf %544, %543 : vector<8x1xf32>
    %546 = vector.shape_cast %50 : vector<1x128xi1> to vector<1x128xi1>
    %547 = vector.broadcast %546 : vector<1x128xi1> to vector<8x128xi1>
    %548 = vector.shape_cast %537 : vector<8x1xf32> to vector<8x1xf32>
    %549 = vector.broadcast %548 : vector<8x1xf32> to vector<8x128xf32>
    %550 = vector.shape_cast %545 : vector<8x1xf32> to vector<8x1xf32>
    %551 = vector.broadcast %550 : vector<8x1xf32> to vector<8x128xf32>
    %552 = arith.select %547, %549, %551 : vector<8x128xi1>, vector<8x128xf32>
    %553 = arith.mulf %529, %552 : vector<8x128xf32>
    %cst_168 = arith.constant 1.250000e-01 : f32
    %554 = vector.broadcast %cst_168 : f32 to vector<8x128xf32>
    %555 = arith.mulf %553, %554 : vector<8x128xf32>
    %cst_169 = arith.constant dense<0.000000e+00> : vector<128xf32>
    %556 = vector.multi_reduction <add>, %555, %cst_169 [0] : vector<8x128xf32> to vector<128xf32>
    %557 = vector.shape_cast %556 : vector<128xf32> to vector<1x128xf32>
    %558 = tpu.reciprocal %557 {approx = true} : vector<1x128xf32> -> vector<1x128xf32>
    %559 = vector.broadcast %558 : vector<1x128xf32> to vector<8x128xf32>
    %560 = arith.mulf %555, %559 : vector<8x128xf32>
    %cst_170 = arith.constant 1.562500e-02 : f32
    %561 = vector.broadcast %cst_170 : f32 to vector<8x128xf32>
    %562 = arith.mulf %560, %561 : vector<8x128xf32>
    %cst_171 = arith.constant 0.000000e+00 : f32
    %563 = vector.shape_cast %50 : vector<1x128xi1> to vector<1x128xi1>
    %564 = vector.broadcast %563 : vector<1x128xi1> to vector<8x128xi1>
    %565 = vector.broadcast %cst_171 : f32 to vector<8x128xf32>
    %566 = arith.select %564, %562, %565 : vector<8x128xi1>, vector<8x128xf32>
    %cst_172 = arith.constant dense<0.000000e+00> : vector<8xf32>
    %567 = vector.multi_reduction <add>, %566, %cst_172 [1] : vector<8x128xf32> to vector<8xf32>
    %568 = vector.shape_cast %567 : vector<8xf32> to vector<8x1xf32>
    %cst_173 = arith.constant 1.000000e+00 : f32
    %569 = vector.broadcast %cst_173 : f32 to vector<8x1xf32>
    %570 = arith.divf %569, %568 : vector<8x1xf32>
    %cst_174 = arith.constant 0.000000e+00 : f32
    %571 = vector.shape_cast %55 : vector<1x128xi1> to vector<1x128xi1>
    %572 = vector.broadcast %571 : vector<1x128xi1> to vector<8x128xi1>
    %573 = vector.broadcast %cst_174 : f32 to vector<8x128xf32>
    %574 = arith.select %572, %562, %573 : vector<8x128xi1>, vector<8x128xf32>
    %cst_175 = arith.constant dense<0.000000e+00> : vector<8xf32>
    %575 = vector.multi_reduction <add>, %574, %cst_175 [1] : vector<8x128xf32> to vector<8xf32>
    %576 = vector.shape_cast %575 : vector<8xf32> to vector<8x1xf32>
    %cst_176 = arith.constant 1.000000e+00 : f32
    %577 = vector.broadcast %cst_176 : f32 to vector<8x1xf32>
    %578 = arith.divf %577, %576 : vector<8x1xf32>
    %579 = vector.shape_cast %50 : vector<1x128xi1> to vector<1x128xi1>
    %580 = vector.broadcast %579 : vector<1x128xi1> to vector<8x128xi1>
    %581 = vector.shape_cast %570 : vector<8x1xf32> to vector<8x1xf32>
    %582 = vector.broadcast %581 : vector<8x1xf32> to vector<8x128xf32>
    %583 = vector.shape_cast %578 : vector<8x1xf32> to vector<8x1xf32>
    %584 = vector.broadcast %583 : vector<8x1xf32> to vector<8x128xf32>
    %585 = arith.select %580, %582, %584 : vector<8x128xi1>, vector<8x128xf32>
    %586 = arith.mulf %562, %585 : vector<8x128xf32>
    %cst_177 = arith.constant 1.250000e-01 : f32
    %587 = vector.broadcast %cst_177 : f32 to vector<8x128xf32>
    %588 = arith.mulf %586, %587 : vector<8x128xf32>
    %cst_178 = arith.constant dense<0.000000e+00> : vector<128xf32>
    %589 = vector.multi_reduction <add>, %588, %cst_178 [0] : vector<8x128xf32> to vector<128xf32>
    %590 = vector.shape_cast %589 : vector<128xf32> to vector<1x128xf32>
    %cst_179 = arith.constant 1.000000e+00 : f32
    %591 = vector.broadcast %cst_179 : f32 to vector<1x128xf32>
    %592 = arith.divf %591, %590 : vector<1x128xf32>
    %593 = vector.broadcast %592 : vector<1x128xf32> to vector<8x128xf32>
    %594 = arith.mulf %588, %593 : vector<8x128xf32>
    %cst_180 = arith.constant 1.562500e-02 : f32
    %595 = vector.broadcast %cst_180 : f32 to vector<8x128xf32>
    %596 = arith.mulf %594, %595 : vector<8x128xf32>
    %cst_181 = arith.constant 6.400000e+01 : f32
    %597 = vector.broadcast %cst_181 : f32 to vector<8x128xf32>
    %598 = arith.mulf %596, %597 : vector<8x128xf32>
    %cst_182 = arith.constant dense<0xFF800000> : vector<128xf32>
    %599 = vector.multi_reduction <maximumf>, %598, %cst_182 [0] : vector<8x128xf32> to vector<128xf32>
    %600 = vector.shape_cast %599 : vector<128xf32> to vector<1x128xf32>
    %601 = vector.broadcast %600 : vector<1x128xf32> to vector<8x128xf32>
    %602 = arith.cmpf oge, %598, %601 : vector<8x128xf32>
    %c8_i32_183 = arith.constant 8 : i32
    %603 = vector.broadcast %c8_i32_183 : i32 to vector<8x128xi32>
    %604 = arith.select %602, %44, %603 : vector<8x128xi1>, vector<8x128xi32>
    %cst_184 = arith.constant dense<2147483647> : vector<128xi32>
    %605 = vector.multi_reduction <minsi>, %604, %cst_184 [0] : vector<8x128xi32> to vector<128xi32>
    %606 = vector.shape_cast %605 : vector<128xi32> to vector<1x128xi32>
    %607 = vector.broadcast %606 : vector<1x128xi32> to vector<8x128xi32>
    %608 = arith.cmpi eq, %44, %607 : vector<8x128xi32>
    %609 = vector.broadcast %50 : vector<1x128xi1> to vector<8x128xi1>
    %610 = arith.andi %609, %608 : vector<8x128xi1>
    %cst_185 = arith.constant 1.000000e+00 : f32
    %cst_186 = arith.constant 0.000000e+00 : f32
    %611 = vector.broadcast %cst_185 : f32 to vector<8x128xf32>
    %612 = vector.broadcast %cst_186 : f32 to vector<8x128xf32>
    %613 = arith.select %610, %611, %612 : vector<8x128xi1>, vector<8x128xf32>
    %614 = vector.broadcast %55 : vector<1x128xi1> to vector<8x128xi1>
    %615 = arith.andi %614, %608 : vector<8x128xi1>
    %cst_187 = arith.constant 1.000000e+00 : f32
    %cst_188 = arith.constant 0.000000e+00 : f32
    %616 = vector.broadcast %cst_187 : f32 to vector<8x128xf32>
    %617 = vector.broadcast %cst_188 : f32 to vector<8x128xf32>
    %618 = arith.select %615, %616, %617 : vector<8x128xi1>, vector<8x128xf32>
    %619 = tpu.concatenate %613, %618 in 0 : vector<8x128xf32>, vector<8x128xf32> -> vector<16x128xf32>
    %cst_189 = arith.constant dense<0.000000e+00> : vector<16x32xf32>
    %620 = tpu.matmul %619, %12, %cst_189 {dimension_numbers = #tpu.dot_dimension_numbers<[1], [1], [0], [0], [0, 0, 1, 0], [], []>} : vector<16x128xf32>, vector<32x128xf32>, vector<16x32xf32> -> vector<16x32xf32>
    %cst_190 = arith.constant dense<0.000000e+00> : vector<16xf32>
    %621 = vector.multi_reduction <add>, %619, %cst_190 [1] : vector<16x128xf32> to vector<16xf32>
    %622 = vector.shape_cast %621 : vector<16xf32> to vector<16x1xf32>
    %cst_191 = arith.constant 0.000000e+00 : f32
    %623 = vector.broadcast %cst_191 : f32 to vector<16x1xf32>
    %624 = arith.cmpf ogt, %622, %623 : vector<16x1xf32>
    %cst_192 = arith.constant 1.000000e+00 : f32
    %625 = vector.broadcast %cst_192 : f32 to vector<16x1xf32>
    %626 = arith.select %624, %622, %625 : vector<16x1xi1>, vector<16x1xf32>
    %cst_193 = arith.constant 0.000000e+00 : f32
    %627 = vector.broadcast %cst_193 : f32 to vector<16x1xf32>
    %628 = arith.cmpf ogt, %622, %627 : vector<16x1xf32>
    %629 = tpu.reciprocal %626 {approx = true} : vector<16x1xf32> -> vector<16x1xf32>
    %630 = vector.broadcast %629 : vector<16x1xf32> to vector<16x32xf32>
    %631 = arith.mulf %620, %630 : vector<16x32xf32>
    %cst_194 = arith.constant 0.000000e+00 : f32
    %632 = vector.shape_cast %628 : vector<16x1xi1> to vector<16x1xi1>
    %633 = vector.broadcast %632 : vector<16x1xi1> to vector<16x32xi1>
    %634 = vector.broadcast %cst_194 : f32 to vector<16x32xf32>
    %635 = arith.select %633, %631, %634 : vector<16x32xi1>, vector<16x32xf32>
    %636 = arith.mulf %635, %635 : vector<16x32xf32>
    %cst_195 = arith.constant dense<0.000000e+00> : vector<16xf32>
    %637 = vector.multi_reduction <add>, %636, %cst_195 [1] : vector<16x32xf32> to vector<16xf32>
    %638 = vector.shape_cast %637 : vector<16xf32> to vector<16x1xf32>
    %cst_196 = arith.constant 9.99999996E-13 : f32
    %639 = vector.broadcast %cst_196 : f32 to vector<16x1xf32>
    %640 = arith.addf %638, %639 : vector<16x1xf32>
    %641 = math.rsqrt %640 : vector<16x1xf32>
    %642 = vector.broadcast %641 : vector<16x1xf32> to vector<16x32xf32>
    %643 = arith.mulf %635, %642 : vector<16x32xf32>
    %c0_197 = arith.constant 0 : index
    %c0_198 = arith.constant 0 : index
    %644 = vector.load %arg12[%c0_197, %c0_198] : memref<8x128xf32, #tpu.memory_space<vmem>>, vector<8x128xf32>
    tpu.vector_store %arg12[%c0_197, %c0_198], %598 {strides = array<i32>} : memref<8x128xf32, #tpu.memory_space<vmem>>, vector<8x128xf32>,
    %c0_199 = arith.constant 0 : index
    %c0_200 = arith.constant 0 : index
    %645 = vector.load %arg13[%c0_199, %c0_200] : memref<1x128xi32, #tpu.memory_space<vmem>>, vector<1x128xi32>
    tpu.vector_store %arg13[%c0_199, %c0_200], %606 {strides = array<i32>} : memref<1x128xi32, #tpu.memory_space<vmem>>, vector<1x128xi32>,
    %c0_201 = arith.constant 0 : index
    %c0_202 = arith.constant 0 : index
    %646 = vector.load %arg14[%c0_201, %c0_202] : memref<16x32xf32, #tpu.memory_space<vmem>>, vector<16x32xf32>
    tpu.vector_store %arg14[%c0_201, %c0_202], %643 {strides = array<i32>} : memref<16x32xf32, #tpu.memory_space<vmem>>, vector<16x32xf32>,
    return
  }
}

</mosaic_0001>

<llo_original>
// kernel: clusternet_contrast_forward.1
$region0: #{clusternet_contrast_forward.1}
  #allocation0 [shape = 'u32[]', space=smem, size = 0x4, offset = 0x4, fixed_abs, tag = 'smem constant byte address 0x4 - core index']
  #allocation1 [shape = 'u32[144,128]{1,0:T(1,128)}', space=vmem, size = 0x12000, scoped, tag = 'internal scratch']
  %s0 = inlined_call_operand.vmem [shape: f32[4,128], index: 0, kind: input, shape index: {}]
  %s1 = inlined_call_operand.vmem [shape: f32[16,4], index: 1, kind: input, shape index: {}]
  %s2 = inlined_call_operand.vmem [shape: f32[16,1], index: 2, kind: input, shape index: {}]
  %s3 = inlined_call_operand.vmem [shape: f32[32,16], index: 3, kind: input, shape index: {}]
  %s4 = inlined_call_operand.vmem [shape: f32[32,1], index: 4, kind: input, shape index: {}]
  %s5 = inlined_call_operand.vmem [shape: f32[16,32], index: 5, kind: input, shape index: {}]
  %s6 = inlined_call_operand.vmem [shape: f32[16,1], index: 6, kind: input, shape index: {}]
  %s7 = inlined_call_operand.vmem [shape: f32[4,16], index: 7, kind: input, shape index: {}]
  %s8 = inlined_call_operand.vmem [shape: f32[4,1], index: 8, kind: input, shape index: {}]
  %s9 = inlined_call_operand.vmem [shape: f32[16,32], index: 9, kind: input, shape index: {}]
  %s10 = inlined_call_operand.vmem [shape: f32[4,128], index: 10, kind: output, shape index: {0}]
  %s11 = inlined_call_operand.vmem [shape: f32[32,128], index: 11, kind: output, shape index: {1}]
  %s12 = inlined_call_operand.vmem [shape: f32[8,128], index: 12, kind: output, shape index: {2}]
  %s13 = inlined_call_operand.vmem [shape: s32[1,128], index: 13, kind: output, shape index: {3}]
  %s14 = inlined_call_operand.hbm [shape: f32[16,32], index: 14, kind: output, shape index: {4}]
  %15 = xla_tuple %s10, %s11, %s12, %s13, %s14
  %s16 = sld [smem:[#allocation0]]
  $region82: #{clusternet_contrast_forward.1} parent=0
    _
  %s18 = ssub.s32 1, %s16
  %s19 = scalar_select 0, %s18, %s16
  $region1: #{clusternet_contrast_forward.1} parent=0
    #allocation2 [shape = 'u8[8192]{0}', space=vmem, size = 0x2000, scoped, tag = 'output window, operand 4, single buffered']
    #allocation3 [shape = 's32[1]{0}', space=sflag, size = 0x4, scoped, tag = 'scoped memory for clusternet_contrast_forward.1']
    %20 = vsyncpa [#allocation3], 0
    // Predicated region
    $region2: #{clusternet_contrast_forward.1} parent=1 // pred_check
      _
    $region3: #{clusternet_contrast_forward.1} parent=1 // pred_check_branch
      %22 = sbr.rel (0) target = $region5
    $region4: #{clusternet_contrast_forward.1} parent=1 // pred_region
      _
    $region5: #{clusternet_contrast_forward.1} parent=1 // pred_fallthru
      _
    // Predicated region
    $region6: #{clusternet_contrast_forward.1} parent=1 // pred_check
      _
    $region7: #{clusternet_contrast_forward.1} parent=1 // pred_check_branch
      %24 = sbr.rel (0) target = $region9
    $region8: #{clusternet_contrast_forward.1} parent=1 // pred_region
      _
    $region9: #{clusternet_contrast_forward.1} parent=1 // pred_fallthru
      _
    // Predicated region
    $region10: #{clusternet_contrast_forward.1} parent=1 // pred_check
      _
    $region11: #{clusternet_contrast_forward.1} parent=1 // pred_check_branch
      %26 = sbr.rel (0) target = $region13
    $region12: #{clusternet_contrast_forward.1} parent=1 // pred_region
      _
    $region13: #{clusternet_contrast_forward.1} parent=1 // pred_fallthru
      _
    // Predicated region
    $region14: #{clusternet_contrast_forward.1} parent=1 // pred_check
      _
    $region15: #{clusternet_contrast_forward.1} parent=1 // pred_check_branch
      %28 = sbr.rel (0) target = $region17
    $region16: #{clusternet_contrast_forward.1} parent=1 // pred_region
      _
    $region17: #{clusternet_contrast_forward.1} parent=1 // pred_fallthru
      _
    // Predicated region
    $region18: #{clusternet_contrast_forward.1} parent=1 // pred_check
      _
    $region19: #{clusternet_contrast_forward.1} parent=1 // pred_check_branch
      %30 = sbr.rel (0) target = $region21
    $region20: #{clusternet_contrast_forward.1} parent=1 // pred_region
      _
    $region21: #{clusternet_contrast_forward.1} parent=1 // pred_fallthru
      _
    // Predicated region
    $region22: #{clusternet_contrast_forward.1} parent=1 // pred_check
      _
    $region23: #{clusternet_contrast_forward.1} parent=1 // pred_check_branch
      %32 = sbr.rel (0) target = $region25
    $region24: #{clusternet_contrast_forward.1} parent=1 // pred_region
      _
    $region25: #{clusternet_contrast_forward.1} parent=1 // pred_fallthru
      _
    // Predicated region
    $region26: #{clusternet_contrast_forward.1} parent=1 // pred_check
      _
    $region27: #{clusternet_contrast_forward.1} parent=1 // pred_check_branch
      %34 = sbr.rel (0) target = $region29
    $region28: #{clusternet_contrast_forward.1} parent=1 // pred_region
      _
    $region29: #{clusternet_contrast_forward.1} parent=1 // pred_fallthru
      _
    // Predicated region
    $region30: #{clusternet_contrast_forward.1} parent=1 // pred_check
      _
    $region31: #{clusternet_contrast_forward.1} parent=1 // pred_check_branch
      %36 = sbr.rel (0) target = $region33
    $region32: #{clusternet_contrast_forward.1} parent=1 // pred_region
      _
    $region33: #{clusternet_contrast_forward.1} parent=1 // pred_fallthru
      _
    // Predicated region
    $region34: #{clusternet_contrast_forward.1} parent=1 // pred_check
      _
    $region35: #{clusternet_contrast_forward.1} parent=1 // pred_check_branch
      %38 = sbr.rel (0) target = $region37
    $region36: #{clusternet_contrast_forward.1} parent=1 // pred_region
      _
    $region37: #{clusternet_contrast_forward.1} parent=1 // pred_fallthru
      _
    // Predicated region
    $region38: #{clusternet_contrast_forward.1} parent=1 // pred_check
      _
    $region39: #{clusternet_contrast_forward.1} parent=1 // pred_check_branch
      %40 = sbr.rel (0) target = $region41
    $region40: #{clusternet_contrast_forward.1} parent=1 // pred_region
      _
    $region41: #{clusternet_contrast_forward.1} parent=1 // pred_fallthru
      _
    %v41 = vld [vmem:[%s0] sm:$0xf]
    %v42 = vld [vmem:[%s1] sm:$0xff]
    %v43 = vld [vmem:[%s1 + $0x8] sm:$0xff]
    %v44 = vld [vmem:[%s2] sm:$0xff]
    %v45 = vld [vmem:[%s2 + $0x8] sm:$0xff]
    %47 = vset.pattern.permute.xlu0 0
    %48 = vperm.xlu0 %47, %v44
    %v49 = vpop.permute.xlu0 %48
    %52 = vset.pattern.permute.xlu0 0
    %53 = vperm.xlu0 %52, %v45
    %v54 = vpop.permute.xlu0 %53
    %vm56 = vcmask 31744
    %v58 = vsel %vm56, %v42, 0
    %v61 = vsel %vm56, %v43, 0
    %vm63 = vcmask 1043456
    %v65 = vsel %vm63, %v41, 0
    %67 = vmatprep.subr.mxu0 0.0
    %68 = vmatpush1.msra.mxu0 0.0
    %69 = vmatprep.subr.mxu0 0.0
    %70 = vmatpush1.msra.mxu0 0.0
    %71 = vmatprep.subr.mxu0 0.0
    %72 = vmatpush1.msra.mxu0 0.0
    %73 = vmatprep.subr.mxu0 0.0
    %74 = vmatpush1.msra.mxu0 0.0
    %75 = vmatprep.subr.mxu0 0.0
    %76 = vmatpush1.msra.mxu0 0.0
    %77 = vmatprep.subr.mxu0 0.0
    %78 = vmatpush1.msra.mxu0 0.0
    %79 = vmatprep.subr.mxu0 0.0
    %80 = vmatpush1.msra.mxu0 0.0
    %81 = vmatprep.subr.mxu0 0.0
    %82 = vmatpush1.msra.mxu0 0.0
    %83 = vmatprep.subr.mxu0 0.0
    %84 = vmatpush1.msra.mxu0 0.0
    %85 = vmatprep.subr.mxu0 0.0
    %86 = vmatpush1.msra.mxu0 0.0
    %87 = vmatprep.subr.mxu0 0.0
    %88 = vmatpush1.msra.mxu0 0.0
    %89 = vmatprep.subr.mxu0 0.0
    %90 = vmatpush1.msra.mxu0 0.0
    %91 = vmatprep.subr.mxu0 0.0
    %92 = vmatpush1.msra.mxu0 0.0
    %93 = vmatprep.subr.mxu0 0.0
    %94 = vmatpush1.msra.mxu0 0.0
    %95 = vmatprep.subr.mxu0 0.0
    %96 = vmatpush1.msra.mxu0 0.0
    %97 = vmatprep.subr.mxu0 0.0
    %98 = vmatpush1.msra.mxu0 %v65
    %99 = vmatprep.subr.mxu0 0.0
    %100 = vmatpush2.msra.mxu0 0.0
    %101 = vmatprep.subr.mxu0 0.0
    %102 = vmatpush2.msra.mxu0 0.0
    %103 = vmatprep.subr.mxu0 0.0
    %104 = vmatpush2.msra.mxu0 0.0
    %105 = vmatprep.subr.mxu0 0.0
    %106 = vmatpush2.msra.mxu0 0.0
    %107 = vmatprep.subr.mxu0 0.0
    %108 = vmatpush2.msra.mxu0 0.0
    %109 = vmatprep.subr.mxu0 0.0
    %110 = vmatpush2.msra.mxu0 0.0
    %111 = vmatprep.subr.mxu0 0.0
    %112 = vmatpush2.msra.mxu0 0.0
    %113 = vmatprep.subr.mxu0 0.0
    %114 = vmatpush2.msra.mxu0 0.0
    %115 = vmatprep.subr.mxu0 0.0
    %116 = vmatpush2.msra.mxu0 0.0
    %117 = vmatprep.subr.mxu0 0.0
    %118 = vmatpush2.msra.mxu0 0.0
    %119 = vmatprep.subr.mxu0 0.0
    %120 = vmatpush2.msra.mxu0 0.0
    %121 = vmatprep.subr.mxu0 0.0
    %122 = vmatpush2.msra.mxu0 0.0
    %123 = vmatprep.subr.mxu0 0.0
    %124 = vmatpush2.msra.mxu0 0.0
    %125 = vmatprep.subr.mxu0 0.0
    %126 = vmatpush2.msra.mxu0 0.0
    %127 = vmatprep.subr.mxu0 0.0
    %128 = vmatpush2.msra.mxu0 0.0
    %129 = vmatprep.subr.mxu0 0.0
    %130 = vmatpush2.msra.mxu0 0.0
    %131 = vmatprep.mubr.f32.mxu0 0.0
    %132 = vmatmul.mubr.f32.gmra.mxu0 %v58
    %v133 = vpop.f32.mrf.mxu0
    %v134 = vadd.f32 %v49, %v133
    %v135 = vpop.f32.mrf.mxu0
    %136 = vmatprep.mubr.f32.mxu0 0.0
    %137 = vmatmul.mubr.f32.gmra.mxu0 %v61
    %v138 = vpop.f32.mrf.mxu0
    %v139 = vadd.f32 %v54, %v138
    %v140 = vpop.f32.mrf.mxu0
    %141 = vdwg.mxu0
    %v142 = vmax.f32 %v134, 0.0
    %v143 = vmax.f32 %v139, 0.0
    %v144 = vld [vmem:[%s3] sm:$0xff]
    %v145 = vld [vmem:[%s3 + $0x8] sm:$0xff]
    %v146 = vld [vmem:[%s3 + $0x10] sm:$0xff]
    %v147 = vld [vmem:[%s3 + $0x18] sm:$0xff]
    %v148 = vld [vmem:[%s4] sm:$0xff]
    %v149 = vld [vmem:[%s4 + $0x8] sm:$0xff]
    %v150 = vld [vmem:[%s4 + $0x10] sm:$0xff]
    %v151 = vld [vmem:[%s4 + $0x18] sm:$0xff]
    %153 = vset.pattern.permute.xlu0 0
    %154 = vperm.xlu0 %153, %v148
    %v155 = vpop.permute.xlu0 %154
    %158 = vset.pattern.permute.xlu0 0
    %159 = vperm.xlu0 %158, %v149
    %v160 = vpop.permute.xlu0 %159
    %163 = vset.pattern.permute.xlu0 0
    %164 = vperm.xlu0 %163, %v150
    %v165 = vpop.permute.xlu0 %164
    %168 = vset.pattern.permute.xlu0 0
    %169 = vperm.xlu0 %168, %v151
    %v170 = vpop.permute.xlu0 %169
    %vm172 = vcmask 130048
    %v174 = vsel %vm172, %v144, 0
    %v177 = vsel %vm172, %v145, 0
    %v180 = vsel %vm172, %v146, 0
    %v183 = vsel %vm172, %v147, 0
    %185 = vmatprep.subr.mxu0 0.0
    %186 = vmatpush1.msra.mxu0 0.0
    %187 = vmatprep.subr.mxu0 0.0
    %188 = vmatpush1.msra.mxu0 0.0
    %189 = vmatprep.subr.mxu0 0.0
    %190 = vmatpush1.msra.mxu0 0.0
    %191 = vmatprep.subr.mxu0 0.0
    %192 = vmatpush1.msra.mxu0 0.0
    %193 = vmatprep.subr.mxu0 0.0
    %194 = vmatpush1.msra.mxu0 0.0
    %195 = vmatprep.subr.mxu0 0.0
    %196 = vmatpush1.msra.mxu0 0.0
    %197 = vmatprep.subr.mxu0 0.0
    %198 = vmatpush1.msra.mxu0 0.0
    %199 = vmatprep.subr.mxu0 0.0
    %200 = vmatpush1.msra.mxu0 0.0
    %201 = vmatprep.subr.mxu0 0.0
    %202 = vmatpush1.msra.mxu0 0.0
    %203 = vmatprep.subr.mxu0 0.0
    %204 = vmatpush1.msra.mxu0 0.0
    %205 = vmatprep.subr.mxu0 0.0
    %206 = vmatpush1.msra.mxu0 0.0
    %207 = vmatprep.subr.mxu0 0.0
    %208 = vmatpush1.msra.mxu0 0.0
    %209 = vmatprep.subr.mxu0 0.0
    %210 = vmatpush1.msra.mxu0 0.0
    %211 = vmatprep.subr.mxu0 0.0
    %212 = vmatpush1.msra.mxu0 0.0
    %213 = vmatprep.subr.mxu0 0.0
    %214 = vmatpush1.msra.mxu0 %v143
    %215 = vmatprep.subr.mxu0 0.0
    %216 = vmatpush1.msra.mxu0 %v142
    %217 = vmatprep.subr.mxu0 0.0
    %218 = vmatpush2.msra.mxu0 0.0
    %219 = vmatprep.subr.mxu0 0.0
    %220 = vmatpush2.msra.mxu0 0.0
    %221 = vmatprep.subr.mxu0 0.0
    %222 = vmatpush2.msra.mxu0 0.0
    %223 = vmatprep.subr.mxu0 0.0
    %224 = vmatpush2.msra.mxu0 0.0
    %225 = vmatprep.subr.mxu0 0.0
    %226 = vmatpush2.msra.mxu0 0.0
    %227 = vmatprep.subr.mxu0 0.0
    %228 = vmatpush2.msra.mxu0 0.0
    %229 = vmatprep.subr.mxu0 0.0
    %230 = vmatpush2.msra.mxu0 0.0
    %231 = vmatprep.subr.mxu0 0.0
    %232 = vmatpush2.msra.mxu0 0.0
    %233 = vmatprep.subr.mxu0 0.0
    %234 = vmatpush2.msra.mxu0 0.0
    %235 = vmatprep.subr.mxu0 0.0
    %236 = vmatpush2.msra.mxu0 0.0
    %237 = vmatprep.subr.mxu0 0.0
    %238 = vmatpush2.msra.mxu0 0.0
    %239 = vmatprep.subr.mxu0 0.0
    %240 = vmatpush2.msra.mxu0 0.0
    %241 = vmatprep.subr.mxu0 0.0
    %242 = vmatpush2.msra.mxu0 0.0
    %243 = vmatprep.subr.mxu0 0.0
    %244 = vmatpush2.msra.mxu0 0.0
    %245 = vmatprep.subr.mxu0 0.0
    %246 = vmatpush2.msra.mxu0 0.0
    %247 = vmatprep.subr.mxu0 0.0
    %248 = vmatpush2.msra.mxu0 0.0
    %249 = vmatprep.mubr.f32.mxu0 0.0
    %250 = vmatmul.mubr.f32.gmra.mxu0 %v174
    %v251 = vpop.f32.mrf.mxu0
    %v252 = vadd.f32 %v155, %v251
    %v253 = vpop.f32.mrf.mxu0
    %254 = vmatprep.mubr.f32.mxu0 0.0
    %255 = vmatmul.mubr.f32.gmra.mxu0 %v177
    %v256 = vpop.f32.mrf.mxu0
    %v257 = vadd.f32 %v160, %v256
    %v258 = vpop.f32.mrf.mxu0
    %259 = vmatprep.mubr.f32.mxu0 0.0
    %260 = vmatmul.mubr.f32.gmra.mxu0 %v180
    %v261 = vpop.f32.mrf.mxu0
    %v262 = vadd.f32 %v165, %v261
    %v263 = vpop.f32.mrf.mxu0
    %264 = vmatprep.mubr.f32.mxu0 0.0
    %265 = vmatmul.mubr.f32.gmra.mxu0 %v183
    %v266 = vpop.f32.mrf.mxu0
    %v267 = vadd.f32 %v170, %v266
    %v268 = vpop.f32.mrf.mxu0
    %269 = vdwg.mxu0
    %v270 = vld [vmem:[%s5] sm:$0xff]
    %v271 = vld [vmem:[%s5 + $0x8] sm:$0xff]
    %v272 = vld [vmem:[%s6] sm:$0xff]
    %v273 = vld [vmem:[%s6 + $0x8] sm:$0xff]
    %275 = vset.pattern.permute.xlu0 0
    %276 = vperm.xlu0 %275, %v272
    %v277 = vpop.permute.xlu0 %276
    %280 = vset.pattern.permute.xlu0 0
    %281 = vperm.xlu0 %280, %v273
    %v282 = vpop.permute.xlu0 %281
    %vm284 = vcmask 261120
    %v286 = vsel %vm284, %v270, 0
    %v289 = vsel %vm284, %v271, 0
    %291 = vmatprep.subr.mxu0 0.0
    %292 = vmatpush1.msra.mxu0 0.0
    %293 = vmatprep.subr.mxu0 0.0
    %294 = vmatpush1.msra.mxu0 0.0
    %295 = vmatprep.subr.mxu0 0.0
    %296 = vmatpush1.msra.mxu0 0.0
    %297 = vmatprep.subr.mxu0 0.0
    %298 = vmatpush1.msra.mxu0 0.0
    %299 = vmatprep.subr.mxu0 0.0
    %300 = vmatpush1.msra.mxu0 0.0
    %301 = vmatprep.subr.mxu0 0.0
    %302 = vmatpush1.msra.mxu0 0.0
    %303 = vmatprep.subr.mxu0 0.0
    %304 = vmatpush1.msra.mxu0 0.0
    %305 = vmatprep.subr.mxu0 0.0
    %306 = vmatpush1.msra.mxu0 0.0
    %307 = vmatprep.subr.mxu0 0.0
    %308 = vmatpush1.msra.mxu0 0.0
    %309 = vmatprep.subr.mxu0 0.0
    %310 = vmatpush1.msra.mxu0 0.0
    %311 = vmatprep.subr.mxu0 0.0
    %312 = vmatpush1.msra.mxu0 0.0
    %313 = vmatprep.subr.mxu0 0.0
    %314 = vmatpush1.msra.mxu0 0.0
    %315 = vmatprep.subr.mxu0 0.0
    %316 = vmatpush1.msra.mxu0 %v267
    %317 = vmatprep.subr.mxu0 0.0
    %318 = vmatpush1.msra.mxu0 %v262
    %319 = vmatprep.subr.mxu0 0.0
    %320 = vmatpush1.msra.mxu0 %v257
    %321 = vmatprep.subr.mxu0 0.0
    %322 = vmatpush1.msra.mxu0 %v252
    %323 = vmatprep.subr.mxu0 0.0
    %324 = vmatpush2.msra.mxu0 0.0
    %325 = vmatprep.subr.mxu0 0.0
    %326 = vmatpush2.msra.mxu0 0.0
    %327 = vmatprep.subr.mxu0 0.0
    %328 = vmatpush2.msra.mxu0 0.0
    %329 = vmatprep.subr.mxu0 0.0
    %330 = vmatpush2.msra.mxu0 0.0
    %331 = vmatprep.subr.mxu0 0.0
    %332 = vmatpush2.msra.mxu0 0.0
    %333 = vmatprep.subr.mxu0 0.0
    %334 = vmatpush2.msra.mxu0 0.0
    %335 = vmatprep.subr.mxu0 0.0
    %336 = vmatpush2.msra.mxu0 0.0
    %337 = vmatprep.subr.mxu0 0.0
    %338 = vmatpush2.msra.mxu0 0.0
    %339 = vmatprep.subr.mxu0 0.0
    %340 = vmatpush2.msra.mxu0 0.0
    %341 = vmatprep.subr.mxu0 0.0
    %342 = vmatpush2.msra.mxu0 0.0
    %343 = vmatprep.subr.mxu0 0.0
    %344 = vmatpush2.msra.mxu0 0.0
    %345 = vmatprep.subr.mxu0 0.0
    %346 = vmatpush2.msra.mxu0 0.0
    %347 = vmatprep.subr.mxu0 0.0
    %348 = vmatpush2.msra.mxu0 0.0
    %349 = vmatprep.subr.mxu0 0.0
    %350 = vmatpush2.msra.mxu0 0.0
    %351 = vmatprep.subr.mxu0 0.0
    %352 = vmatpush2.msra.mxu0 0.0
    %353 = vmatprep.subr.mxu0 0.0
    %354 = vmatpush2.msra.mxu0 0.0
    %355 = vmatprep.mubr.f32.mxu0 0.0
    %356 = vmatmul.mubr.f32.gmra.mxu0 %v286
    %v357 = vpop.f32.mrf.mxu0
    %v358 = vadd.f32 %v277, %v357
    %v359 = vpop.f32.mrf.mxu0
    %360 = vmatprep.mubr.f32.mxu0 0.0
    %361 = vmatmul.mubr.f32.gmra.mxu0 %v289
    %v362 = vpop.f32.mrf.mxu0
    %v363 = vadd.f32 %v282, %v362
    %v364 = vpop.f32.mrf.mxu0
    %365 = vdwg.mxu0
    %v366 = vmax.f32 %v358, 0.0
    %v367 = vmax.f32 %v363, 0.0
    %v368 = vld [vmem:[%s7] sm:$0xf]
    %v369 = vld [vmem:[%s8] sm:$0xf]
    %371 = vset.pattern.permute.xlu0 0
    %372 = vperm.xlu0 %371, %v369
    %v373 = vpop.permute.xlu0 %372
    %v376 = vsel %vm172, %v368, 0
    %378 = vmatprep.subr.mxu0 0.0
    %379 = vmatpush1.msra.mxu0 0.0
    %380 = vmatprep.subr.mxu0 0.0
    %381 = vmatpush1.msra.mxu0 0.0
    %382 = vmatprep.subr.mxu0 0.0
    %383 = vmatpush1.msra.mxu0 0.0
    %384 = vmatprep.subr.mxu0 0.0
    %385 = vmatpush1.msra.mxu0 0.0
    %386 = vmatprep.subr.mxu0 0.0
    %387 = vmatpush1.msra.mxu0 0.0
    %388 = vmatprep.subr.mxu0 0.0
    %389 = vmatpush1.msra.mxu0 0.0
    %390 = vmatprep.subr.mxu0 0.0
    %391 = vmatpush1.msra.mxu0 0.0
    %392 = vmatprep.subr.mxu0 0.0
    %393 = vmatpush1.msra.mxu0 0.0
    %394 = vmatprep.subr.mxu0 0.0
    %395 = vmatpush1.msra.mxu0 0.0
    %396 = vmatprep.subr.mxu0 0.0
    %397 = vmatpush1.msra.mxu0 0.0
    %398 = vmatprep.subr.mxu0 0.0
    %399 = vmatpush1.msra.mxu0 0.0
    %400 = vmatprep.subr.mxu0 0.0
    %401 = vmatpush1.msra.mxu0 0.0
    %402 = vmatprep.subr.mxu0 0.0
    %403 = vmatpush1.msra.mxu0 0.0
    %404 = vmatprep.subr.mxu0 0.0
    %405 = vmatpush1.msra.mxu0 0.0
    %406 = vmatprep.subr.mxu0 0.0
    %407 = vmatpush1.msra.mxu0 %v367
    %408 = vmatprep.subr.mxu0 0.0
    %409 = vmatpush1.msra.mxu0 %v366
    %410 = vmatprep.subr.mxu0 0.0
    %411 = vmatpush2.msra.mxu0 0.0
    %412 = vmatprep.subr.mxu0 0.0
    %413 = vmatpush2.msra.mxu0 0.0
    %414 = vmatprep.subr.mxu0 0.0
    %415 = vmatpush2.msra.mxu0 0.0
    %416 = vmatprep.subr.mxu0 0.0
    %417 = vmatpush2.msra.mxu0 0.0
    %418 = vmatprep.subr.mxu0 0.0
    %419 = vmatpush2.msra.mxu0 0.0
    %420 = vmatprep.subr.mxu0 0.0
    %421 = vmatpush2.msra.mxu0 0.0
    %422 = vmatprep.subr.mxu0 0.0
    %423 = vmatpush2.msra.mxu0 0.0
    %424 = vmatprep.subr.mxu0 0.0
    %425 = vmatpush2.msra.mxu0 0.0
    %426 = vmatprep.subr.mxu0 0.0
    %427 = vmatpush2.msra.mxu0 0.0
    %428 = vmatprep.subr.mxu0 0.0
    %429 = vmatpush2.msra.mxu0 0.0
    %430 = vmatprep.subr.mxu0 0.0
    %431 = vmatpush2.msra.mxu0 0.0
    %432 = vmatprep.subr.mxu0 0.0
    %433 = vmatpush2.msra.mxu0 0.0
    %434 = vmatprep.subr.mxu0 0.0
    %435 = vmatpush2.msra.mxu0 0.0
    %436 = vmatprep.subr.mxu0 0.0
    %437 = vmatpush2.msra.mxu0 0.0
    %438 = vmatprep.subr.mxu0 0.0
    %439 = vmatpush2.msra.mxu0 0.0
    %440 = vmatprep.subr.mxu0 0.0
    %441 = vmatpush2.msra.mxu0 0.0
    %442 = vmatprep.mubr.f32.mxu0 0.0
    %443 = vmatmul.mubr.f32.gmra.mxu0 %v376
    %v444 = vpop.f32.mrf.mxu0
    %v445 = vadd.f32 %v373, %v444
    %v446 = vpop.f32.mrf.mxu0
    %447 = vdwg.mxu0
    %448 = vst [vmem:[%s10] sm:$0xf] %v445
    %449 = vst [vmem:[%s11] sm:$0xff] %v252
    %450 = vst [vmem:[%s11 + $0x8] sm:$0xff] %v257
    %451 = vst [vmem:[%s11 + $0x10] sm:$0xff] %v262
    %452 = vst [vmem:[%s11 + $0x18] sm:$0xff] %v267
    %v453 = vmul.f32 %v252, %v252
    %v454 = vmul.f32 %v257, %v257
    %v455 = vmul.f32 %v262, %v262
    %v456 = vmul.f32 %v267, %v267
    %v457 = vadd.f32 %v453, %v454
    %v458 = vadd.f32 %v457, %v455
    %v459 = vadd.f32 %v458, %v456
    %v460 = vrot.slane %v459, 4
    %v461 = vadd.f32 %v459, %v460
    %v462 = vrot.slane %v461, 2
    %v463 = vadd.f32 %v461, %v462
    %v464 = vrot.slane %v463, 1
    %v465 = vadd.f32 %v463, %v464
    %v466 = vadd.f32 %v465, 1e-12
    %v467 = vrsqrt.pop %v466
    %v468 = vmul.f32 %v252, %v467
    %v469 = vmul.f32 %v257, %v467
    %v470 = vmul.f32 %v262, %v467
    %v471 = vmul.f32 %v267, %v467
    %v472 = vld [vmem:[%s9] sm:$0xff]
    %v473 = vld [vmem:[%s9 + $0x8] sm:$0xff]
    %v474 = vmul.f32 %v472, %v472
    %v475 = vmul.f32 %v473, %v473
    %v476 = vsel %vm284, %v474, 0.0
    %477 = vadd.xlane.f32.xlu0 %v476
    %v478 = vpop.xlane.xlu0 %477
    %v479 = vsel %vm284, %v475, 0.0
    %480 = vadd.xlane.f32.xlu0 %v479
    %v481 = vpop.xlane.xlu0 %480
    %v482 = vadd.f32 %v478, 1e-12
    %v483 = vadd.f32 %v481, 1e-12
    %v484 = vrsqrt.pop %v482
    %v485 = vrsqrt.pop %v483
    %v486 = vmul.f32 %v472, %v484
    %v487 = vmul.f32 %v473, %v485
    %v488 = vlaneseq
    %v489 = vshrl.u32 %v488, 7
    %v490 = vlaneseq
    %v491 = vand.u32 %v490, 127
    %vm492 = vcmp.ge.s32.totalorder %v491, 0
    %vm493 = vcmp.lt.s32.totalorder %v491, 64
    %vm494 = vmand %vm492, %vm493
    %vm495 = vcmp.ge.s32.totalorder %v491, 64
    %vm496 = vcmp.lt.s32.totalorder %v491, 128
    %vm497 = vmand %vm495, %vm496
    %v499 = vsel %vm284, %v486, 0
    %v502 = vsel %vm284, %v487, 0
    %504 = vmatprep.subr.mxu0 0.0
    %505 = vmatpush1.msra.mxu0 0.0
    %506 = vmatprep.subr.mxu0 0.0
    %507 = vmatpush1.msra.mxu0 0.0
    %508 = vmatprep.subr.mxu0 0.0
    %509 = vmatpush1.msra.mxu0 0.0
    %510 = vmatprep.subr.mxu0 0.0
    %511 = vmatpush1.msra.mxu0 0.0
    %512 = vmatprep.subr.mxu0 0.0
    %513 = vmatpush1.msra.mxu0 0.0
    %514 = vmatprep.subr.mxu0 0.0
    %515 = vmatpush1.msra.mxu0 0.0
    %516 = vmatprep.subr.mxu0 0.0
    %517 = vmatpush1.msra.mxu0 0.0
    %518 = vmatprep.subr.mxu0 0.0
    %519 = vmatpush1.msra.mxu0 0.0
    %520 = vmatprep.subr.mxu0 0.0
    %521 = vmatpush1.msra.mxu0 0.0
    %522 = vmatprep.subr.mxu0 0.0
    %523 = vmatpush1.msra.mxu0 0.0
    %524 = vmatprep.subr.mxu0 0.0
    %525 = vmatpush1.msra.mxu0 0.0
    %526 = vmatprep.subr.mxu0 0.0
    %527 = vmatpush1.msra.mxu0 0.0
    %528 = vmatprep.subr.mxu0 0.0
    %529 = vmatpush1.msra.mxu0 %v471
    %530 = vmatprep.subr.mxu0 0.0
    %531 = vmatpush1.msra.mxu0 %v470
    %532 = vmatprep.subr.mxu0 0.0
    %533 = vmatpush1.msra.mxu0 %v469
    %534 = vmatprep.subr.mxu0 0.0
    %535 = vmatpush1.msra.mxu0 %v468
    %536 = vmatprep.subr.mxu0 0.0
    %537 = vmatpush2.msra.mxu0 0.0
    %538 = vmatprep.subr.mxu0 0.0
    %539 = vmatpush2.msra.mxu0 0.0
    %540 = vmatprep.subr.mxu0 0.0
    %541 = vmatpush2.msra.mxu0 0.0
    %542 = vmatprep.subr.mxu0 0.0
    %543 = vmatpush2.msra.mxu0 0.0
    %544 = vmatprep.subr.mxu0 0.0
    %545 = vmatpush2.msra.mxu0 0.0
    %546 = vmatprep.subr.mxu0 0.0
    %547 = vmatpush2.msra.mxu0 0.0
    %548 = vmatprep.subr.mxu0 0.0
    %549 = vmatpush2.msra.mxu0 0.0
    %550 = vmatprep.subr.mxu0 0.0
    %551 = vmatpush2.msra.mxu0 0.0
    %552 = vmatprep.subr.mxu0 0.0
    %553 = vmatpush2.msra.mxu0 0.0
    %554 = vmatprep.subr.mxu0 0.0
    %555 = vmatpush2.msra.mxu0 0.0
    %556 = vmatprep.subr.mxu0 0.0
    %557 = vmatpush2.msra.mxu0 0.0
    %558 = vmatprep.subr.mxu0 0.0
    %559 = vmatpush2.msra.mxu0 0.0
    %560 = vmatprep.subr.mxu0 0.0
    %561 = vmatpush2.msra.mxu0 0.0
    %562 = vmatprep.subr.mxu0 0.0
    %563 = vmatpush2.msra.mxu0 0.0
    %564 = vmatprep.subr.mxu0 0.0
    %565 = vmatpush2.msra.mxu0 0.0
    %566 = vmatprep.subr.mxu0 0.0
    %567 = vmatpush2.msra.mxu0 0.0
    %568 = vmatprep.mubr.f32.mxu0 0.0
    %569 = vmatmul.mubr.f32.gmra.mxu0 %v499
    %v570 = vpop.f32.mrf.mxu0
    %v571 = vadd.f32 0.0, %v570
    %v572 = vpop.f32.mrf.mxu0
    %573 = vmatprep.mubr.f32.mxu0 0.0
    %574 = vmatmul.mubr.f32.gmra.mxu0 %v502
    %v575 = vpop.f32.mrf.mxu0
    %v576 = vadd.f32 0.0, %v575
    %v577 = vpop.f32.mrf.mxu0
    %578 = vdwg.mxu0
    %v579 = vsel %vm494, 1, 0
    %vm580 = vcmp.eq.s32.totalorder %v579, 1
    %v581 = vsel %vm580, %v571, %v576
    %v582 = vrot.slane %v581, 4
    %v583 = vmax.f32 %v581, %v582
    %v584 = vrot.slane %v583, 2
    %v585 = vmax.f32 %v583, %v584
    %v586 = vrot.slane %v585, 1
    %v587 = vmax.f32 %v585, %v586
    %v588 = vsub.f32 %v581, %v587
    %v589 = vmul.f32 %v588, 1.442695
    %v590 = vpow.pop %v589
    %v591 = vrot.slane %v590, 4
    %v592 = vadd.f32 %v590, %v591
    %v593 = vrot.slane %v592, 2
    %v594 = vadd.f32 %v592, %v593
    %v595 = vrot.slane %v594, 1
    %v596 = vadd.f32 %v594, %v595
    %v597 = vrcp.pop %v596
    %v598 = vmul.f32 1.0, %v597
    %v599 = vmul.f32 %v590, %v598
    %v600 = vmul.f32 %v599, 20.0
    %v601 = vmul.f32 %v600, 1.442695
    %v602 = vpow.pop %v601
    %v603 = vsel %vm580, %v602, 0.0
    %604 = vadd.xlane.f32.xlu0 %v603
    %v605 = vpop.xlane.xlu0 %604
    %v606 = vrot.slane %v605, 4
    %v607 = vadd.f32 %v605, %v606
    %v608 = vrot.slane %v607, 2
    %v609 = vadd.f32 %v607, %v608
    %v610 = vrot.slane %v609, 1
    %v611 = vadd.f32 %v609, %v610
    %s612 = vtos %v611
    %v613 = vstv %s612
    %v614 = vrcp.pop %v613
    %v615 = vmul.f32 1.0, %v614
    %v616 = vsel %vm497, 1, 0
    %vm617 = vcmp.eq.s32.totalorder %v616, 1
    %v618 = vsel %vm617, %v602, 0.0
    %619 = vadd.xlane.f32.xlu0 %v618
    %v620 = vpop.xlane.xlu0 %619
    %v621 = vrot.slane %v620, 4
    %v622 = vadd.f32 %v620, %v621
    %v623 = vrot.slane %v622, 2
    %v624 = vadd.f32 %v622, %v623
    %v625 = vrot.slane %v624, 1
    %v626 = vadd.f32 %v624, %v625
    %s627 = vtos %v626
    %v628 = vstv %s627
    %v629 = vrcp.pop %v628
    %v630 = vmul.f32 1.0, %v629
    %v631 = vsel %vm494, %v615, %v630
    %v632 = vmul.f32 %v602, %v631
    %v633 = vsel %vm580, %v632, 0.0
    %634 = vadd.xlane.f32.xlu0 %v633
    %v635 = vpop.xlane.xlu0 %634
    %v636 = vrcp.pop %v635
    %v637 = vmul.f32 1.0, %v636
    %v638 = vsel %vm617, %v632, 0.0
    %639 = vadd.xlane.f32.xlu0 %v638
    %v640 = vpop.xlane.xlu0 %639
    %v641 = vrcp.pop %v640
    %v642 = vmul.f32 1.0, %v641
    %v643 = vsel %vm580, %v637, %v642
    %v644 = vmul.f32 %v632, %v643
    %v645 = vmul.f32 %v644, 0.125
    %v646 = vrot.slane %v645, 4
    %v647 = vadd.f32 %v645, %v646
    %v648 = vrot.slane %v647, 2
    %v649 = vadd.f32 %v647, %v648
    %v650 = vrot.slane %v649, 1
    %v651 = vadd.f32 %v649, %v650
    %v652 = vrcp.pop %v651
    %v653 = vmul.f32 %v645, %v652
    %v654 = vmul.f32 %v653, 0.015625
    %v655 = vsel %vm580, %v654, 0.0
    %656 = vadd.xlane.f32.xlu0 %v655
    %v657 = vpop.xlane.xlu0 %656
    %v658 = vrcp.pop %v657
    %v659 = vmul.f32 1.0, %v658
    %v660 = vsel %vm617, %v654, 0.0
    %661 = vadd.xlane.f32.xlu0 %v660
    %v662 = vpop.xlane.xlu0 %661
    %v663 = vrcp.pop %v662
    %v664 = vmul.f32 1.0, %v663
    %v665 = vsel %vm580, %v659, %v664
    %v666 = vmul.f32 %v654, %v665
    %v667 = vmul.f32 %v666, 0.125
    %v668 = vrot.slane %v667, 4
    %v669 = vadd.f32 %v667, %v668
    %v670 = vrot.slane %v669, 2
    %v671 = vadd.f32 %v669, %v670
    %v672 = vrot.slane %v671, 1
    %v673 = vadd.f32 %v671, %v672
    %v674 = vrcp.pop %v673
    %v675 = vmul.f32 %v667, %v674
    %v676 = vmul.f32 %v675, 0.015625
    %v677 = vsel %vm580, %v676, 0.0
    %678 = vadd.xlane.f32.xlu0 %v677
    %v679 = vpop.xlane.xlu0 %678
    %v680 = vrcp.pop %v679
    %v681 = vmul.f32 1.0, %v680
    %v682 = vsel %vm617, %v676, 0.0
    %683 = vadd.xlane.f32.xlu0 %v682
    %v684 = vpop.xlane.xlu0 %683
    %v685 = vrcp.pop %v684
    %v686 = vmul.f32 1.0, %v685
    %v687 = vsel %vm580, %v681, %v686
    %v688 = vmul.f32 %v676, %v687
    %v689 = vmul.f32 %v688, 0.125
    %v690 = vrot.slane %v689, 4
    %v691 = vadd.f32 %v689, %v690
    %v692 = vrot.slane %v691, 2
    %v693 = vadd.f32 %v691, %v692
    %v694 = vrot.slane %v693, 1
    %v695 = vadd.f32 %v693, %v694
    %v696 = vrcp.pop %v695
    %v697 = vmul.f32 1.0, %v696
    %v698 = vmul.f32 %v689, %v697
    %v699 = vmul.f32 %v698, 0.015625
    %v700 = vmul.f32 %v699, 64.0
    %v701 = vrot.slane %v700, 4
    %v702 = vmax.f32 %v700, %v701
    %v703 = vrot.slane %v702, 2
    %v704 = vmax.f32 %v702, %v703
    %v705 = vrot.slane %v704, 1
    %v706 = vmax.f32 %v704, %v705
    %vm707 = vcmp.ge.f32.partialorder %v700, %v706
    %v708 = vsel %vm707, %v489, 8
    %v709 = vrot.slane %v708, 4
    %vm710 = vcmp.lt.s32.totalorder %v708, %v709
    %v711 = vsel %vm710, %v708, %v709
    %v712 = vrot.slane %v711, 2
    %vm713 = vcmp.lt.s32.totalorder %v711, %v712
    %v714 = vsel %vm713, %v711, %v712
    %v715 = vrot.slane %v714, 1
    %vm716 = vcmp.lt.s32.totalorder %v714, %v715
    %v717 = vsel %vm716, %v714, %v715
    %vm718 = vcmp.eq.s32.totalorder %v489, %v717
    %vm719 = vmand %vm580, %vm718
    %v720 = vsel %vm719, 1.0, 0.0
    %vm721 = vmand %vm617, %vm718
    %v722 = vsel %vm721, 1.0, 0.0
    %723 = vmatprep.subr.mxu0 0.0
    %724 = vmatpush1.xpose.msra.mxu0 0.0
    %725 = vmatprep.subr.mxu0 0.0
    %726 = vmatpush1.xpose.msra.mxu0 0.0
    %727 = vmatprep.subr.mxu0 0.0
    %728 = vmatpush1.xpose.msra.mxu0 0.0
    %729 = vmatprep.subr.mxu0 0.0
    %730 = vmatpush1.xpose.msra.mxu0 0.0
    %731 = vmatprep.subr.mxu0 0.0
    %732 = vmatpush1.xpose.msra.mxu0 0.0
    %733 = vmatprep.subr.mxu0 0.0
    %734 = vmatpush1.xpose.msra.mxu0 0.0
    %735 = vmatprep.subr.mxu0 0.0
    %736 = vmatpush1.xpose.msra.mxu0 0.0
    %737 = vmatprep.subr.mxu0 0.0
    %738 = vmatpush1.xpose.msra.mxu0 0.0
    %739 = vmatprep.subr.mxu0 0.0
    %740 = vmatpush1.xpose.msra.mxu0 0.0
    %741 = vmatprep.subr.mxu0 0.0
    %742 = vmatpush1.xpose.msra.mxu0 0.0
    %743 = vmatprep.subr.mxu0 0.0
    %744 = vmatpush1.xpose.msra.mxu0 0.0
    %745 = vmatprep.subr.mxu0 0.0
    %746 = vmatpush1.xpose.msra.mxu0 0.0
    %747 = vmatprep.subr.mxu0 0.0
    %748 = vmatpush1.xpose.msra.mxu0 %v267
    %749 = vmatprep.subr.mxu0 0.0
    %750 = vmatpush1.xpose.msra.mxu0 %v262
    %751 = vmatprep.subr.mxu0 0.0
    %752 = vmatpush1.xpose.msra.mxu0 %v257
    %753 = vmatprep.subr.mxu0 0.0
    %754 = vmatpush1.xpose.msra.mxu0 %v252
    %755 = vmatprep.subr.mxu0 0.0
    %756 = vmatpush2.xpose.msra.mxu0 0.0
    %757 = vmatprep.subr.mxu0 0.0
    %758 = vmatpush2.xpose.msra.mxu0 0.0
    %759 = vmatprep.subr.mxu0 0.0
    %760 = vmatpush2.xpose.msra.mxu0 0.0
    %761 = vmatprep.subr.mxu0 0.0
    %762 = vmatpush2.xpose.msra.mxu0 0.0
    %763 = vmatprep.subr.mxu0 0.0
    %764 = vmatpush2.xpose.msra.mxu0 0.0
    %765 = vmatprep.subr.mxu0 0.0
    %766 = vmatpush2.xpose.msra.mxu0 0.0
    %767 = vmatprep.subr.mxu0 0.0
    %768 = vmatpush2.xpose.msra.mxu0 0.0
    %769 = vmatprep.subr.mxu0 0.0
    %770 = vmatpush2.xpose.msra.mxu0 0.0
    %771 = vmatprep.subr.mxu0 0.0
    %772 = vmatpush2.xpose.msra.mxu0 0.0
    %773 = vmatprep.subr.mxu0 0.0
    %774 = vmatpush2.xpose.msra.mxu0 0.0
    %775 = vmatprep.subr.mxu0 0.0
    %776 = vmatpush2.xpose.msra.mxu0 0.0
    %777 = vmatprep.subr.mxu0 0.0
    %778 = vmatpush2.xpose.msra.mxu0 0.0
    %779 = vmatprep.subr.mxu0 0.0
    %780 = vmatpush2.xpose.msra.mxu0 0.0
    %781 = vmatprep.subr.mxu0 0.0
    %782 = vmatpush2.xpose.msra.mxu0 0.0
    %783 = vmatprep.subr.mxu0 0.0
    %784 = vmatpush2.xpose.msra.mxu0 0.0
    %785 = vmatprep.subr.mxu0 0.0
    %786 = vmatpush2.xpose.msra.mxu0 0.0
    %787 = vmatprep.mubr.f32.mxu0 0.0
    %788 = vmatmul.mubr.f32.gmra.mxu0 %v720
    %v789 = vpop.f32.mrf.mxu0
    %v790 = vadd.f32 0.0, %v789
    %v791 = vpop.f32.mrf.mxu0
    %792 = vmatprep.mubr.f32.mxu0 0.0
    %793 = vmatmul.mubr.f32.gmra.mxu0 %v722
    %v794 = vpop.f32.mrf.mxu0
    %v795 = vadd.f32 0.0, %v794
    %v796 = vpop.f32.mrf.mxu0
    %797 = vdwg.mxu0
    %798 = vadd.xlane.f32.xlu0 %v720
    %v799 = vpop.xlane.xlu0 %798
    %800 = vadd.xlane.f32.xlu0 %v722
    %v801 = vpop.xlane.xlu0 %800
    %vm802 = vcmp.gt.f32.partialorder %v799, 0.0
    %vm803 = vcmp.gt.f32.partialorder %v801, 0.0
    %v804 = vsel %vm802, %v799, 1.0
    %v805 = vsel %vm803, %v801, 1.0
    %v806 = vrcp.pop %v804
    %v807 = vrcp.pop %v805
    %v808 = vmul.f32 %v790, %v806
    %v809 = vmul.f32 %v795, %v807
    %v810 = vsel %vm802, 1, 0
    %v811 = vsel %vm803, 1, 0
    %vm812 = vcmp.eq.s32.totalorder %v810, 1
    %vm813 = vcmp.eq.s32.totalorder %v811, 1
    %v814 = vsel %vm812, %v808, 0.0
    %v815 = vsel %vm813, %v809, 0.0
    %v816 = vmul.f32 %v814, %v814
    %v817 = vmul.f32 %v815, %v815
    %v818 = vsel %vm284, %v816, 0.0
    %819 = vadd.xlane.f32.xlu0 %v818
    %v820 = vpop.xlane.xlu0 %819
    %v821 = vsel %vm284, %v817, 0.0
    %822 = vadd.xlane.f32.xlu0 %v821
    %v823 = vpop.xlane.xlu0 %822
    %v824 = vadd.f32 %v820, 1e-12
    %v825 = vadd.f32 %v823, 1e-12
    %v826 = vrsqrt.pop %v824
    %v827 = vrsqrt.pop %v825
    %v828 = vmul.f32 %v814, %v826
    %v829 = vmul.f32 %v815, %v827
    %v831 = vsel %vm284, %v828, 0
    %v834 = vsel %vm284, %v829, 0
    %836 = vmatprep.subr.mxu0 0.0
    %837 = vmatpush1.msra.mxu0 0.0
    %838 = vmatprep.subr.mxu0 0.0
    %839 = vmatpush1.msra.mxu0 0.0
    %840 = vmatprep.subr.mxu0 0.0
    %841 = vmatpush1.msra.mxu0 0.0
    %842 = vmatprep.subr.mxu0 0.0
    %843 = vmatpush1.msra.mxu0 0.0
    %844 = vmatprep.subr.mxu0 0.0
    %845 = vmatpush1.msra.mxu0 0.0
    %846 = vmatprep.subr.mxu0 0.0
    %847 = vmatpush1.msra.mxu0 0.0
    %848 = vmatprep.subr.mxu0 0.0
    %849 = vmatpush1.msra.mxu0 0.0
    %850 = vmatprep.subr.mxu0 0.0
    %851 = vmatpush1.msra.mxu0 0.0
    %852 = vmatprep.subr.mxu0 0.0
    %853 = vmatpush1.msra.mxu0 0.0
    %854 = vmatprep.subr.mxu0 0.0
    %855 = vmatpush1.msra.mxu0 0.0
    %856 = vmatprep.subr.mxu0 0.0
    %857 = vmatpush1.msra.mxu0 0.0
    %858 = vmatprep.subr.mxu0 0.0
    %859 = vmatpush1.msra.mxu0 0.0
    %860 = vmatprep.subr.mxu0 0.0
    %861 = vmatpush1.msra.mxu0 %v471
    %862 = vmatprep.subr.mxu0 0.0
    %863 = vmatpush1.msra.mxu0 %v470
    %864 = vmatprep.subr.mxu0 0.0
    %865 = vmatpush1.msra.mxu0 %v469
    %866 = vmatprep.subr.mxu0 0.0
    %867 = vmatpush1.msra.mxu0 %v468
    %868 = vmatprep.subr.mxu0 0.0
    %869 = vmatpush2.msra.mxu0 0.0
    %870 = vmatprep.subr.mxu0 0.0
    %871 = vmatpush2.msra.mxu0 0.0
    %872 = vmatprep.subr.mxu0 0.0
    %873 = vmatpush2.msra.mxu0 0.0
    %874 = vmatprep.subr.mxu0 0.0
    %875 = vmatpush2.msra.mxu0 0.0
    %876 = vmatprep.subr.mxu0 0.0
    %877 = vmatpush2.msra.mxu0 0.0
    %878 = vmatprep.subr.mxu0 0.0
    %879 = vmatpush2.msra.mxu0 0.0
    %880 = vmatprep.subr.mxu0 0.0
    %881 = vmatpush2.msra.mxu0 0.0
    %882 = vmatprep.subr.mxu0 0.0
    %883 = vmatpush2.msra.mxu0 0.0
    %884 = vmatprep.subr.mxu0 0.0
    %885 = vmatpush2.msra.mxu0 0.0
    %886 = vmatprep.subr.mxu0 0.0
    %887 = vmatpush2.msra.mxu0 0.0
    %888 = vmatprep.subr.mxu0 0.0
    %889 = vmatpush2.msra.mxu0 0.0
    %890 = vmatprep.subr.mxu0 0.0
    %891 = vmatpush2.msra.mxu0 0.0
    %892 = vmatprep.subr.mxu0 0.0
    %893 = vmatpush2.msra.mxu0 0.0
    %894 = vmatprep.subr.mxu0 0.0
    %895 = vmatpush2.msra.mxu0 0.0
    %896 = vmatprep.subr.mxu0 0.0
    %897 = vmatpush2.msra.mxu0 0.0
    %898 = vmatprep.subr.mxu0 0.0
    %899 = vmatpush2.msra.mxu0 0.0
    %900 = vmatprep.mubr.f32.mxu0 0.0
    %901 = vmatmul.mubr.f32.gmra.mxu0 %v831
    %v902 = vpop.f32.mrf.mxu0
    %v903 = vadd.f32 0.0, %v902
    %v904 = vpop.f32.mrf.mxu0
    %905 = vmatprep.mubr.f32.mxu0 0.0
    %906 = vmatmul.mubr.f32.gmra.mxu0 %v834
    %v907 = vpop.f32.mrf.mxu0
    %v908 = vadd.f32 0.0, %v907
    %v909 = vpop.f32.mrf.mxu0
    %910 = vdwg.mxu0
    %v911 = vsel %vm580, %v903, %v908
    %v912 = vrot.slane %v911, 4
    %v913 = vmax.f32 %v911, %v912
    %v914 = vrot.slane %v913, 2
    %v915 = vmax.f32 %v913, %v914
    %v916 = vrot.slane %v915, 1
    %v917 = vmax.f32 %v915, %v916
    %v918 = vsub.f32 %v911, %v917
    %v919 = vmul.f32 %v918, 1.442695
    %v920 = vpow.pop %v919
    %v921 = vrot.slane %v920, 4
    %v922 = vadd.f32 %v920, %v921
    %v923 = vrot.slane %v922, 2
    %v924 = vadd.f32 %v922, %v923
    %v925 = vrot.slane %v924, 1
    %v926 = vadd.f32 %v924, %v925
    %v927 = vrcp.pop %v926
    %v928 = vmul.f32 1.0, %v927
    %v929 = vmul.f32 %v920, %v928
    %v930 = vmul.f32 %v929, 20.0
    %v931 = vmul.f32 %v930, 1.442695
    %v932 = vpow.pop %v931
    %v933 = vsel %vm580, %v932, 0.0
    %934 = vadd.xlane.f32.xlu0 %v933
    %v935 = vpop.xlane.xlu0 %934
    %v936 = vrot.slane %v935, 4
    %v937 = vadd.f32 %v935, %v936
    %v938 = vrot.slane %v937, 2
    %v939 = vadd.f32 %v937, %v938
    %v940 = vrot.slane %v939, 1
    %v941 = vadd.f32 %v939, %v940
    %s942 = vtos %v941
    %v943 = vstv %s942
    %v944 = vrcp.pop %v943
    %v945 = vmul.f32 1.0, %v944
    %v946 = vsel %vm617, %v932, 0.0
    %947 = vadd.xlane.f32.xlu0 %v946
    %v948 = vpop.xlane.xlu0 %947
    %v949 = vrot.slane %v948, 4
    %v950 = vadd.f32 %v948, %v949
    %v951 = vrot.slane %v950, 2
    %v952 = vadd.f32 %v950, %v951
    %v953 = vrot.slane %v952, 1
    %v954 = vadd.f32 %v952, %v953
    %s955 = vtos %v954
    %v956 = vstv %s955
    %v957 = vrcp.pop %v956
    %v958 = vmul.f32 1.0, %v957
    %v959 = vsel %vm494, %v945, %v958
    %v960 = vmul.f32 %v932, %v959
    %v961 = vsel %vm580, %v960, 0.0
    %962 = vadd.xlane.f32.xlu0 %v961
    %v963 = vpop.xlane.xlu0 %962
    %v964 = vrcp.pop %v963
    %v965 = vmul.f32 1.0, %v964
    %v966 = vsel %vm617, %v960, 0.0
    %967 = vadd.xlane.f32.xlu0 %v966
    %v968 = vpop.xlane.xlu0 %967
    %v969 = vrcp.pop %v968
    %v970 = vmul.f32 1.0, %v969
    %v971 = vsel %vm580, %v965, %v970
    %v972 = vmul.f32 %v960, %v971
    %v973 = vmul.f32 %v972, 0.125
    %v974 = vrot.slane %v973, 4
    %v975 = vadd.f32 %v973, %v974
    %v976 = vrot.slane %v975, 2
    %v977 = vadd.f32 %v975, %v976
    %v978 = vrot.slane %v977, 1
    %v979 = vadd.f32 %v977, %v978
    %v980 = vrcp.pop %v979
    %v981 = vmul.f32 %v973, %v980
    %v982 = vmul.f32 %v981, 0.015625
    %v983 = vsel %vm580, %v982, 0.0
    %984 = vadd.xlane.f32.xlu0 %v983
    %v985 = vpop.xlane.xlu0 %984
    %v986 = vrcp.pop %v985
    %v987 = vmul.f32 1.0, %v986
    %v988 = vsel %vm617, %v982, 0.0
    %989 = vadd.xlane.f32.xlu0 %v988
    %v990 = vpop.xlane.xlu0 %989
    %v991 = vrcp.pop %v990
    %v992 = vmul.f32 1.0, %v991
    %v993 = vsel %vm580, %v987, %v992
    %v994 = vmul.f32 %v982, %v993
    %v995 = vmul.f32 %v994, 0.125
    %v996 = vrot.slane %v995, 4
    %v997 = vadd.f32 %v995, %v996
    %v998 = vrot.slane %v997, 2
    %v999 = vadd.f32 %v997, %v998
    %v1000 = vrot.slane %v999, 1
    %v1001 = vadd.f32 %v999, %v1000
    %v1002 = vrcp.pop %v1001
    %v1003 = vmul.f32 %v995, %v1002
    %v1004 = vmul.f32 %v1003, 0.015625
    %v1005 = vsel %vm580, %v1004, 0.0
    %1006 = vadd.xlane.f32.xlu0 %v1005
    %v1007 = vpop.xlane.xlu0 %1006
    %v1008 = vrcp.pop %v1007
    %v1009 = vmul.f32 1.0, %v1008
    %v1010 = vsel %vm617, %v1004, 0.0
    %1011 = vadd.xlane.f32.xlu0 %v1010
    %v1012 = vpop.xlane.xlu0 %1011
    %v1013 = vrcp.pop %v1012
    %v1014 = vmul.f32 1.0, %v1013
    %v1015 = vsel %vm580, %v1009, %v1014
    %v1016 = vmul.f32 %v1004, %v1015
    %v1017 = vmul.f32 %v1016, 0.125
    %v1018 = vrot.slane %v1017, 4
    %v1019 = vadd.f32 %v1017, %v1018
    %v1020 = vrot.slane %v1019, 2
    %v1021 = vadd.f32 %v1019, %v1020
    %v1022 = vrot.slane %v1021, 1
    %v1023 = vadd.f32 %v1021, %v1022
    %v1024 = vrcp.pop %v1023
    %v1025 = vmul.f32 1.0, %v1024
    %v1026 = vmul.f32 %v1017, %v1025
    %v1027 = vmul.f32 %v1026, 0.015625
    %v1028 = vmul.f32 %v1027, 64.0
    %v1029 = vrot.slane %v1028, 4
    %v1030 = vmax.f32 %v1028, %v1029
    %v1031 = vrot.slane %v1030, 2
    %v1032 = vmax.f32 %v1030, %v1031
    %v1033 = vrot.slane %v1032, 1
    %v1034 = vmax.f32 %v1032, %v1033
    %vm1035 = vcmp.ge.f32.partialorder %v1028, %v1034
    %v1036 = vsel %vm1035, %v489, 8
    %v1037 = vrot.slane %v1036, 4
    %vm1038 = vcmp.lt.s32.totalorder %v1036, %v1037
    %v1039 = vsel %vm1038, %v1036, %v1037
    %v1040 = vrot.slane %v1039, 2
    %vm1041 = vcmp.lt.s32.totalorder %v1039, %v1040
    %v1042 = vsel %vm1041, %v1039, %v1040
    %v1043 = vrot.slane %v1042, 1
    %vm1044 = vcmp.lt.s32.totalorder %v1042, %v1043
    %v1045 = vsel %vm1044, %v1042, %v1043
    %vm1046 = vcmp.eq.s32.totalorder %v489, %v1045
    %vm1047 = vmand %vm580, %vm1046
    %v1048 = vsel %vm1047, 1.0, 0.0
    %vm1049 = vmand %vm617, %vm1046
    %v1050 = vsel %vm1049, 1.0, 0.0
    %1051 = vmatprep.subr.mxu0 0.0
    %1052 = vmatpush1.xpose.msra.mxu0 0.0
    %1053 = vmatprep.subr.mxu0 0.0
    %1054 = vmatpush1.xpose.msra.mxu0 0.0
    %1055 = vmatprep.subr.mxu0 0.0
    %1056 = vmatpush1.xpose.msra.mxu0 0.0
    %1057 = vmatprep.subr.mxu0 0.0
    %1058 = vmatpush1.xpose.msra.mxu0 0.0
    %1059 = vmatprep.subr.mxu0 0.0
    %1060 = vmatpush1.xpose.msra.mxu0 0.0
    %1061 = vmatprep.subr.mxu0 0.0
    %1062 = vmatpush1.xpose.msra.mxu0 0.0
    %1063 = vmatprep.subr.mxu0 0.0
    %1064 = vmatpush1.xpose.msra.mxu0 0.0
    %1065 = vmatprep.subr.mxu0 0.0
    %1066 = vmatpush1.xpose.msra.mxu0 0.0
    %1067 = vmatprep.subr.mxu0 0.0
    %1068 = vmatpush1.xpose.msra.mxu0 0.0
    %1069 = vmatprep.subr.mxu0 0.0
    %1070 = vmatpush1.xpose.msra.mxu0 0.0
    %1071 = vmatprep.subr.mxu0 0.0
    %1072 = vmatpush1.xpose.msra.mxu0 0.0
    %1073 = vmatprep.subr.mxu0 0.0
    %1074 = vmatpush1.xpose.msra.mxu0 0.0
    %1075 = vmatprep.subr.mxu0 0.0
    %1076 = vmatpush1.xpose.msra.mxu0 %v267
    %1077 = vmatprep.subr.mxu0 0.0
    %1078 = vmatpush1.xpose.msra.mxu0 %v262
    %1079 = vmatprep.subr.mxu0 0.0
    %1080 = vmatpush1.xpose.msra.mxu0 %v257
    %1081 = vmatprep.subr.mxu0 0.0
    %1082 = vmatpush1.xpose.msra.mxu0 %v252
    %1083 = vmatprep.subr.mxu0 0.0
    %1084 = vmatpush2.xpose.msra.mxu0 0.0
    %1085 = vmatprep.subr.mxu0 0.0
    %1086 = vmatpush2.xpose.msra.mxu0 0.0
    %1087 = vmatprep.subr.mxu0 0.0
    %1088 = vmatpush2.xpose.msra.mxu0 0.0
    %1089 = vmatprep.subr.mxu0 0.0
    %1090 = vmatpush2.xpose.msra.mxu0 0.0
    %1091 = vmatprep.subr.mxu0 0.0
    %1092 = vmatpush2.xpose.msra.mxu0 0.0
    %1093 = vmatprep.subr.mxu0 0.0
    %1094 = vmatpush2.xpose.msra.mxu0 0.0
    %1095 = vmatprep.subr.mxu0 0.0
    %1096 = vmatpush2.xpose.msra.mxu0 0.0
    %1097 = vmatprep.subr.mxu0 0.0
    %1098 = vmatpush2.xpose.msra.mxu0 0.0
    %1099 = vmatprep.subr.mxu0 0.0
    %1100 = vmatpush2.xpose.msra.mxu0 0.0
    %1101 = vmatprep.subr.mxu0 0.0
    %1102 = vmatpush2.xpose.msra.mxu0 0.0
    %1103 = vmatprep.subr.mxu0 0.0
    %1104 = vmatpush2.xpose.msra.mxu0 0.0
    %1105 = vmatprep.subr.mxu0 0.0
    %1106 = vmatpush2.xpose.msra.mxu0 0.0
    %1107 = vmatprep.subr.mxu0 0.0
    %1108 = vmatpush2.xpose.msra.mxu0 0.0
    %1109 = vmatprep.subr.mxu0 0.0
    %1110 = vmatpush2.xpose.msra.mxu0 0.0
    %1111 = vmatprep.subr.mxu0 0.0
    %1112 = vmatpush2.xpose.msra.mxu0 0.0
    %1113 = vmatprep.subr.mxu0 0.0
    %1114 = vmatpush2.xpose.msra.mxu0 0.0
    %1115 = vmatprep.mubr.f32.mxu0 0.0
    %1116 = vmatmul.mubr.f32.gmra.mxu0 %v1048
    %v1117 = vpop.f32.mrf.mxu0
    %v1118 = vadd.f32 0.0, %v1117
    %v1119 = vpop.f32.mrf.mxu0
    %1120 = vmatprep.mubr.f32.mxu0 0.0
    %1121 = vmatmul.mubr.f32.gmra.mxu0 %v1050
    %v1122 = vpop.f32.mrf.mxu0
    %v1123 = vadd.f32 0.0, %v1122
    %v1124 = vpop.f32.mrf.mxu0
    %1125 = vdwg.mxu0
    %1126 = vadd.xlane.f32.xlu0 %v1048
    %v1127 = vpop.xlane.xlu0 %1126
    %1128 = vadd.xlane.f32.xlu0 %v1050
    %v1129 = vpop.xlane.xlu0 %1128
    %vm1130 = vcmp.gt.f32.partialorder %v1127, 0.0
    %vm1131 = vcmp.gt.f32.partialorder %v1129, 0.0
    %v1132 = vsel %vm1130, %v1127, 1.0
    %v1133 = vsel %vm1131, %v1129, 1.0
    %v1134 = vrcp.pop %v1132
    %v1135 = vrcp.pop %v1133
    %v1136 = vmul.f32 %v1118, %v1134
    %v1137 = vmul.f32 %v1123, %v1135
    %v1138 = vsel %vm1130, 1, 0
    %v1139 = vsel %vm1131, 1, 0
    %vm1140 = vcmp.eq.s32.totalorder %v1138, 1
    %vm1141 = vcmp.eq.s32.totalorder %v1139, 1
    %v1142 = vsel %vm1140, %v1136, 0.0
    %v1143 = vsel %vm1141, %v1137, 0.0
    %v1144 = vmul.f32 %v1142, %v1142
    %v1145 = vmul.f32 %v1143, %v1143
    %v1146 = vsel %vm284, %v1144, 0.0
    %1147 = vadd.xlane.f32.xlu0 %v1146
    %v1148 = vpop.xlane.xlu0 %1147
    %v1149 = vsel %vm284, %v1145, 0.0
    %1150 = vadd.xlane.f32.xlu0 %v1149
    %v1151 = vpop.xlane.xlu0 %1150
    %v1152 = vadd.f32 %v1148, 1e-12
    %v1153 = vadd.f32 %v1151, 1e-12
    %v1154 = vrsqrt.pop %v1152
    %v1155 = vrsqrt.pop %v1153
    %v1156 = vmul.f32 %v1142, %v1154
    %v1157 = vmul.f32 %v1143, %v1155
    %v1159 = vsel %vm284, %v1156, 0
    %v1162 = vsel %vm284, %v1157, 0
    %1164 = vmatprep.subr.mxu0 0.0
    %1165 = vmatpush1.msra.mxu0 0.0
    %1166 = vmatprep.subr.mxu0 0.0
    %1167 = vmatpush1.msra.mxu0 0.0
    %1168 = vmatprep.subr.mxu0 0.0
    %1169 = vmatpush1.msra.mxu0 0.0
    %1170 = vmatprep.subr.mxu0 0.0
    %1171 = vmatpush1.msra.mxu0 0.0
    %1172 = vmatprep.subr.mxu0 0.0
    %1173 = vmatpush1.msra.mxu0 0.0
    %1174 = vmatprep.subr.mxu0 0.0
    %1175 = vmatpush1.msra.mxu0 0.0
    %1176 = vmatprep.subr.mxu0 0.0
    %1177 = vmatpush1.msra.mxu0 0.0
    %1178 = vmatprep.subr.mxu0 0.0
    %1179 = vmatpush1.msra.mxu0 0.0
    %1180 = vmatprep.subr.mxu0 0.0
    %1181 = vmatpush1.msra.mxu0 0.0
    %1182 = vmatprep.subr.mxu0 0.0
    %1183 = vmatpush1.msra.mxu0 0.0
    %1184 = vmatprep.subr.mxu0 0.0
    %1185 = vmatpush1.msra.mxu0 0.0
    %1186 = vmatprep.subr.mxu0 0.0
    %1187 = vmatpush1.msra.mxu0 0.0
    %1188 = vmatprep.subr.mxu0 0.0
    %1189 = vmatpush1.msra.mxu0 %v471
    %1190 = vmatprep.subr.mxu0 0.0
    %1191 = vmatpush1.msra.mxu0 %v470
    %1192 = vmatprep.subr.mxu0 0.0
    %1193 = vmatpush1.msra.mxu0 %v469
    %1194 = vmatprep.subr.mxu0 0.0
    %1195 = vmatpush1.msra.mxu0 %v468
    %1196 = vmatprep.subr.mxu0 0.0
    %1197 = vmatpush2.msra.mxu0 0.0
    %1198 = vmatprep.subr.mxu0 0.0
    %1199 = vmatpush2.msra.mxu0 0.0
    %1200 = vmatprep.subr.mxu0 0.0
    %1201 = vmatpush2.msra.mxu0 0.0
    %1202 = vmatprep.subr.mxu0 0.0
    %1203 = vmatpush2.msra.mxu0 0.0
    %1204 = vmatprep.subr.mxu0 0.0
    %1205 = vmatpush2.msra.mxu0 0.0
    %1206 = vmatprep.subr.mxu0 0.0
    %1207 = vmatpush2.msra.mxu0 0.0
    %1208 = vmatprep.subr.mxu0 0.0
    %1209 = vmatpush2.msra.mxu0 0.0
    %1210 = vmatprep.subr.mxu0 0.0
    %1211 = vmatpush2.msra.mxu0 0.0
    %1212 = vmatprep.subr.mxu0 0.0
    %1213 = vmatpush2.msra.mxu0 0.0
    %1214 = vmatprep.subr.mxu0 0.0
    %1215 = vmatpush2.msra.mxu0 0.0
    %1216 = vmatprep.subr.mxu0 0.0
    %1217 = vmatpush2.msra.mxu0 0.0
    %1218 = vmatprep.subr.mxu0 0.0
    %1219 = vmatpush2.msra.mxu0 0.0
    %1220 = vmatprep.subr.mxu0 0.0
    %1221 = vmatpush2.msra.mxu0 0.0
    %1222 = vmatprep.subr.mxu0 0.0
    %1223 = vmatpush2.msra.mxu0 0.0
    %1224 = vmatprep.subr.mxu0 0.0
    %1225 = vmatpush2.msra.mxu0 0.0
    %1226 = vmatprep.subr.mxu0 0.0
    %1227 = vmatpush2.msra.mxu0 0.0
    %1228 = vmatprep.mubr.f32.mxu0 0.0
    %1229 = vmatmul.mubr.f32.gmra.mxu0 %v1159
    %v1230 = vpop.f32.mrf.mxu0
    %v1231 = vadd.f32 0.0, %v1230
    %v1232 = vpop.f32.mrf.mxu0
    %1233 = vmatprep.mubr.f32.mxu0 0.0
    %1234 = vmatmul.mubr.f32.gmra.mxu0 %v1162
    %v1235 = vpop.f32.mrf.mxu0
    %v1236 = vadd.f32 0.0, %v1235
    %v1237 = vpop.f32.mrf.mxu0
    %1238 = vdwg.mxu0
    %v1239 = vsel %vm580, %v1231, %v1236
    %v1240 = vrot.slane %v1239, 4
    %v1241 = vmax.f32 %v1239, %v1240
    %v1242 = vrot.slane %v1241, 2
    %v1243 = vmax.f32 %v1241, %v1242
    %v1244 = vrot.slane %v1243, 1
    %v1245 = vmax.f32 %v1243, %v1244
    %v1246 = vsub.f32 %v1239, %v1245
    %v1247 = vmul.f32 %v1246, 1.442695
    %v1248 = vpow.pop %v1247
    %v1249 = vrot.slane %v1248, 4
    %v1250 = vadd.f32 %v1248, %v1249
    %v1251 = vrot.slane %v1250, 2
    %v1252 = vadd.f32 %v1250, %v1251
    %v1253 = vrot.slane %v1252, 1
    %v1254 = vadd.f32 %v1252, %v1253
    %v1255 = vrcp.pop %v1254
    %v1256 = vmul.f32 1.0, %v1255
    %v1257 = vmul.f32 %v1248, %v1256
    %v1258 = vmul.f32 %v1257, 20.0
    %v1259 = vmul.f32 %v1258, 1.442695
    %v1260 = vpow.pop %v1259
    %v1261 = vsel %vm580, %v1260, 0.0
    %1262 = vadd.xlane.f32.xlu0 %v1261
    %v1263 = vpop.xlane.xlu0 %1262
    %v1264 = vrot.slane %v1263, 4
    %v1265 = vadd.f32 %v1263, %v1264
    %v1266 = vrot.slane %v1265, 2
    %v1267 = vadd.f32 %v1265, %v1266
    %v1268 = vrot.slane %v1267, 1
    %v1269 = vadd.f32 %v1267, %v1268
    %s1270 = vtos %v1269
    %v1271 = vstv %s1270
    %v1272 = vrcp.pop %v1271
    %v1273 = vmul.f32 1.0, %v1272
    %v1274 = vsel %vm617, %v1260, 0.0
    %1275 = vadd.xlane.f32.xlu0 %v1274
    %v1276 = vpop.xlane.xlu0 %1275
    %v1277 = vrot.slane %v1276, 4
    %v1278 = vadd.f32 %v1276, %v1277
    %v1279 = vrot.slane %v1278, 2
    %v1280 = vadd.f32 %v1278, %v1279
    %v1281 = vrot.slane %v1280, 1
    %v1282 = vadd.f32 %v1280, %v1281
    %s1283 = vtos %v1282
    %v1284 = vstv %s1283
    %v1285 = vrcp.pop %v1284
    %v1286 = vmul.f32 1.0, %v1285
    %v1287 = vsel %vm494, %v1273, %v1286
    %v1288 = vmul.f32 %v1260, %v1287
    %v1289 = vsel %vm580, %v1288, 0.0
    %1290 = vadd.xlane.f32.xlu0 %v1289
    %v1291 = vpop.xlane.xlu0 %1290
    %v1292 = vrcp.pop %v1291
    %v1293 = vmul.f32 1.0, %v1292
    %v1294 = vsel %vm617, %v1288, 0.0
    %1295 = vadd.xlane.f32.xlu0 %v1294
    %v1296 = vpop.xlane.xlu0 %1295
    %v1297 = vrcp.pop %v1296
    %v1298 = vmul.f32 1.0, %v1297
    %v1299 = vsel %vm580, %v1293, %v1298
    %v1300 = vmul.f32 %v1288, %v1299
    %v1301 = vmul.f32 %v1300, 0.125
    %v1302 = vrot.slane %v1301, 4
    %v1303 = vadd.f32 %v1301, %v1302
    %v1304 = vrot.slane %v1303, 2
    %v1305 = vadd.f32 %v1303, %v1304
    %v1306 = vrot.slane %v1305, 1
    %v1307 = vadd.f32 %v1305, %v1306
    %v1308 = vrcp.pop %v1307
    %v1309 = vmul.f32 %v1301, %v1308
    %v1310 = vmul.f32 %v1309, 0.015625
    %v1311 = vsel %vm580, %v1310, 0.0
    %1312 = vadd.xlane.f32.xlu0 %v1311
    %v1313 = vpop.xlane.xlu0 %1312
    %v1314 = vrcp.pop %v1313
    %v1315 = vmul.f32 1.0, %v1314
    %v1316 = vsel %vm617, %v1310, 0.0
    %1317 = vadd.xlane.f32.xlu0 %v1316
    %v1318 = vpop.xlane.xlu0 %1317
    %v1319 = vrcp.pop %v1318
    %v1320 = vmul.f32 1.0, %v1319
    %v1321 = vsel %vm580, %v1315, %v1320
    %v1322 = vmul.f32 %v1310, %v1321
    %v1323 = vmul.f32 %v1322, 0.125
    %v1324 = vrot.slane %v1323, 4
    %v1325 = vadd.f32 %v1323, %v1324
    %v1326 = vrot.slane %v1325, 2
    %v1327 = vadd.f32 %v1325, %v1326
    %v1328 = vrot.slane %v1327, 1
    %v1329 = vadd.f32 %v1327, %v1328
    %v1330 = vrcp.pop %v1329
    %v1331 = vmul.f32 %v1323, %v1330
    %v1332 = vmul.f32 %v1331, 0.015625
    %v1333 = vsel %vm580, %v1332, 0.0
    %1334 = vadd.xlane.f32.xlu0 %v1333
    %v1335 = vpop.xlane.xlu0 %1334
    %v1336 = vrcp.pop %v1335
    %v1337 = vmul.f32 1.0, %v1336
    %v1338 = vsel %vm617, %v1332, 0.0
    %1339 = vadd.xlane.f32.xlu0 %v1338
    %v1340 = vpop.xlane.xlu0 %1339
    %v1341 = vrcp.pop %v1340
    %v1342 = vmul.f32 1.0, %v1341
    %v1343 = vsel %vm580, %v1337, %v1342
    %v1344 = vmul.f32 %v1332, %v1343
    %v1345 = vmul.f32 %v1344, 0.125
    %v1346 = vrot.slane %v1345, 4
    %v1347 = vadd.f32 %v1345, %v1346
    %v1348 = vrot.slane %v1347, 2
    %v1349 = vadd.f32 %v1347, %v1348
    %v1350 = vrot.slane %v1349, 1
    %v1351 = vadd.f32 %v1349, %v1350
    %v1352 = vrcp.pop %v1351
    %v1353 = vmul.f32 1.0, %v1352
    %v1354 = vmul.f32 %v1345, %v1353
    %v1355 = vmul.f32 %v1354, 0.015625
    %v1356 = vmul.f32 %v1355, 64.0
    %v1357 = vrot.slane %v1356, 4
    %v1358 = vmax.f32 %v1356, %v1357
    %v1359 = vrot.slane %v1358, 2
    %v1360 = vmax.f32 %v1358, %v1359
    %v1361 = vrot.slane %v1360, 1
    %v1362 = vmax.f32 %v1360, %v1361
    %vm1363 = vcmp.ge.f32.partialorder %v1356, %v1362
    %v1364 = vsel %vm1363, %v489, 8
    %v1365 = vrot.slane %v1364, 4
    %vm1366 = vcmp.lt.s32.totalorder %v1364, %v1365
    %v1367 = vsel %vm1366, %v1364, %v1365
    %v1368 = vrot.slane %v1367, 2
    %vm1369 = vcmp.lt.s32.totalorder %v1367, %v1368
    %v1370 = vsel %vm1369, %v1367, %v1368
    %v1371 = vrot.slane %v1370, 1
    %vm1372 = vcmp.lt.s32.totalorder %v1370, %v1371
    %v1373 = vsel %vm1372, %v1370, %v1371
    %vm1374 = vcmp.eq.s32.totalorder %v489, %v1373
    %vm1375 = vmand %vm580, %vm1374
    %v1376 = vsel %vm1375, 1.0, 0.0
    %vm1377 = vmand %vm617, %vm1374
    %v1378 = vsel %vm1377, 1.0, 0.0
    %1379 = vmatprep.subr.mxu0 0.0
    %1380 = vmatpush1.xpose.msra.mxu0 0.0
    %1381 = vmatprep.subr.mxu0 0.0
    %1382 = vmatpush1.xpose.msra.mxu0 0.0
    %1383 = vmatprep.subr.mxu0 0.0
    %1384 = vmatpush1.xpose.msra.mxu0 0.0
    %1385 = vmatprep.subr.mxu0 0.0
    %1386 = vmatpush1.xpose.msra.mxu0 0.0
    %1387 = vmatprep.subr.mxu0 0.0
    %1388 = vmatpush1.xpose.msra.mxu0 0.0
    %1389 = vmatprep.subr.mxu0 0.0
    %1390 = vmatpush1.xpose.msra.mxu0 0.0
    %1391 = vmatprep.subr.mxu0 0.0
    %1392 = vmatpush1.xpose.msra.mxu0 0.0
    %1393 = vmatprep.subr.mxu0 0.0
    %1394 = vmatpush1.xpose.msra.mxu0 0.0
    %1395 = vmatprep.subr.mxu0 0.0
    %1396 = vmatpush1.xpose.msra.mxu0 0.0
    %1397 = vmatprep.subr.mxu0 0.0
    %1398 = vmatpush1.xpose.msra.mxu0 0.0
    %1399 = vmatprep.subr.mxu0 0.0
    %1400 = vmatpush1.xpose.msra.mxu0 0.0
    %1401 = vmatprep.subr.mxu0 0.0
    %1402 = vmatpush1.xpose.msra.mxu0 0.0
    %1403 = vmatprep.subr.mxu0 0.0
    %1404 = vmatpush1.xpose.msra.mxu0 %v267
    %1405 = vmatprep.subr.mxu0 0.0
    %1406 = vmatpush1.xpose.msra.mxu0 %v262
    %1407 = vmatprep.subr.mxu0 0.0
    %1408 = vmatpush1.xpose.msra.mxu0 %v257
    %1409 = vmatprep.subr.mxu0 0.0
    %1410 = vmatpush1.xpose.msra.mxu0 %v252
    %1411 = vmatprep.subr.mxu0 0.0
    %1412 = vmatpush2.xpose.msra.mxu0 0.0
    %1413 = vmatprep.subr.mxu0 0.0
    %1414 = vmatpush2.xpose.msra.mxu0 0.0
    %1415 = vmatprep.subr.mxu0 0.0
    %1416 = vmatpush2.xpose.msra.mxu0 0.0
    %1417 = vmatprep.subr.mxu0 0.0
    %1418 = vmatpush2.xpose.msra.mxu0 0.0
    %1419 = vmatprep.subr.mxu0 0.0
    %1420 = vmatpush2.xpose.msra.mxu0 0.0
    %1421 = vmatprep.subr.mxu0 0.0
    %1422 = vmatpush2.xpose.msra.mxu0 0.0
    %1423 = vmatprep.subr.mxu0 0.0
    %1424 = vmatpush2.xpose.msra.mxu0 0.0
    %1425 = vmatprep.subr.mxu0 0.0
    %1426 = vmatpush2.xpose.msra.mxu0 0.0
    %1427 = vmatprep.subr.mxu0 0.0
    %1428 = vmatpush2.xpose.msra.mxu0 0.0
    %1429 = vmatprep.subr.mxu0 0.0
    %1430 = vmatpush2.xpose.msra.mxu0 0.0
    %1431 = vmatprep.subr.mxu0 0.0
    %1432 = vmatpush2.xpose.msra.mxu0 0.0
    %1433 = vmatprep.subr.mxu0 0.0
    %1434 = vmatpush2.xpose.msra.mxu0 0.0
    %1435 = vmatprep.subr.mxu0 0.0
    %1436 = vmatpush2.xpose.msra.mxu0 0.0
    %1437 = vmatprep.subr.mxu0 0.0
    %1438 = vmatpush2.xpose.msra.mxu0 0.0
    %1439 = vmatprep.subr.mxu0 0.0
    %1440 = vmatpush2.xpose.msra.mxu0 0.0
    %1441 = vmatprep.subr.mxu0 0.0
    %1442 = vmatpush2.xpose.msra.mxu0 0.0
    %1443 = vmatprep.mubr.f32.mxu0 0.0
    %1444 = vmatmul.mubr.f32.gmra.mxu0 %v1376
    %v1445 = vpop.f32.mrf.mxu0
    %v1446 = vadd.f32 0.0, %v1445
    %v1447 = vpop.f32.mrf.mxu0
    %1448 = vmatprep.mubr.f32.mxu0 0.0
    %1449 = vmatmul.mubr.f32.gmra.mxu0 %v1378
    %v1450 = vpop.f32.mrf.mxu0
    %v1451 = vadd.f32 0.0, %v1450
    %v1452 = vpop.f32.mrf.mxu0
    %1453 = vdwg.mxu0
    %1454 = vadd.xlane.f32.xlu0 %v1376
    %v1455 = vpop.xlane.xlu0 %1454
    %1456 = vadd.xlane.f32.xlu0 %v1378
    %v1457 = vpop.xlane.xlu0 %1456
    %vm1458 = vcmp.gt.f32.partialorder %v1455, 0.0
    %vm1459 = vcmp.gt.f32.partialorder %v1457, 0.0
    %v1460 = vsel %vm1458, %v1455, 1.0
    %v1461 = vsel %vm1459, %v1457, 1.0
    %v1462 = vrcp.pop %v1460
    %v1463 = vrcp.pop %v1461
    %v1464 = vmul.f32 %v1446, %v1462
    %v1465 = vmul.f32 %v1451, %v1463
    %v1466 = vsel %vm1458, 1, 0
    %v1467 = vsel %vm1459, 1, 0
    %vm1468 = vcmp.eq.s32.totalorder %v1466, 1
    %vm1469 = vcmp.eq.s32.totalorder %v1467, 1
    %v1470 = vsel %vm1468, %v1464, 0.0
    %v1471 = vsel %vm1469, %v1465, 0.0
    %v1472 = vmul.f32 %v1470, %v1470
    %v1473 = vmul.f32 %v1471, %v1471
    %v1474 = vsel %vm284, %v1472, 0.0
    %1475 = vadd.xlane.f32.xlu0 %v1474
    %v1476 = vpop.xlane.xlu0 %1475
    %v1477 = vsel %vm284, %v1473, 0.0
    %1478 = vadd.xlane.f32.xlu0 %v1477
    %v1479 = vpop.xlane.xlu0 %1478
    %v1480 = vadd.f32 %v1476, 1e-12
    %v1481 = vadd.f32 %v1479, 1e-12
    %v1482 = vrsqrt.pop %v1480
    %v1483 = vrsqrt.pop %v1481
    %v1484 = vmul.f32 %v1470, %v1482
    %v1485 = vmul.f32 %v1471, %v1483
    %1486 = vst [vmem:[%s12] sm:$0xff] %v1356
    %1487 = vst [vmem:[%s13] sm:$0x1] %v1373
    %1488 = vst.msk [vmem:[#allocation2] sm:$0xff] %vm284, %v1484
    %1489 = vst.msk [vmem:[#allocation2 + $0x8] sm:$0xff] %vm284, %v1485
    // Predicated region
    $region42: #{clusternet_contrast_forward.1} parent=1 // pred_check
      _
    $region43: #{clusternet_contrast_forward.1} parent=1 // pred_check_branch
      %1491 = sbr.rel (0) target = $region45
    $region44: #{clusternet_contrast_forward.1} parent=1 // pred_region
      _
    $region45: #{clusternet_contrast_forward.1} parent=1 // pred_fallthru
      _
    // Predicated region
    $region46: #{clusternet_contrast_forward.1} parent=1 // pred_check
      _
    $region47: #{clusternet_contrast_forward.1} parent=1 // pred_check_branch
      %1493 = sbr.rel (0) target = $region49
    $region48: #{clusternet_contrast_forward.1} parent=1 // pred_region
      _
    $region49: #{clusternet_contrast_forward.1} parent=1 // pred_fallthru
      _
    // Predicated region
    $region50: #{clusternet_contrast_forward.1} parent=1 // pred_check
      _
    $region51: #{clusternet_contrast_forward.1} parent=1 // pred_check_branch
      %1495 = sbr.rel (0) target = $region53
    $region52: #{clusternet_contrast_forward.1} parent=1 // pred_region
      _
    $region53: #{clusternet_contrast_forward.1} parent=1 // pred_fallthru
      _
    // Predicated region
    $region54: #{clusternet_contrast_forward.1} parent=1 // pred_check
      _
    $region55: #{clusternet_contrast_forward.1} parent=1 // pred_check_branch
      %1497 = sbr.rel (0) target = $region57
    $region56: #{clusternet_contrast_forward.1} parent=1 // pred_region
      _
    $region57: #{clusternet_contrast_forward.1} parent=1 // pred_fallthru
      _
    // Predicated region
    $region58: #{clusternet_contrast_forward.1} parent=1 // pred_check
      _
    $region59: #{clusternet_contrast_forward.1} parent=1 // pred_check_branch
      %1499 = sbr.rel (0) target = $region61
    $region60: #{clusternet_contrast_forward.1} parent=1 // pred_region
      %s1501 = ssub.s32 256, 256
      %1502 = vsyncadd [#allocation3], %s1501
      %s1503 = sshll.u32 [#allocation2], 4
      %s1504 = int_to_ptr.vmem [resolvable:$true] %s1503
      %1509 = dma.vmem_to_hbm [thread:$0]  %s1504, 256, %s14, [#allocation3], 128, 128, 8
    $region61: #{clusternet_contrast_forward.1} parent=1 // pred_fallthru
      _
    // Predicated region
    $region62: #{clusternet_contrast_forward.1} parent=1 // pred_check
      _
    $region63: #{clusternet_contrast_forward.1} parent=1 // pred_check_branch
      %1511 = sbr.rel (0) target = $region65
    $region64: #{clusternet_contrast_forward.1} parent=1 // pred_region
      _
    $region65: #{clusternet_contrast_forward.1} parent=1 // pred_fallthru
      _
    // Predicated region
    $region66: #{clusternet_contrast_forward.1} parent=1 // pred_check
      _
    $region67: #{clusternet_contrast_forward.1} parent=1 // pred_check_branch
      %1513 = sbr.rel (0) target = $region69
    $region68: #{clusternet_contrast_forward.1} parent=1 // pred_region
      _
    $region69: #{clusternet_contrast_forward.1} parent=1 // pred_fallthru
      _
    // Predicated region
    $region70: #{clusternet_contrast_forward.1} parent=1 // pred_check
      _
    $region71: #{clusternet_contrast_forward.1} parent=1 // pred_check_branch
      %1515 = sbr.rel (0) target = $region73
    $region72: #{clusternet_contrast_forward.1} parent=1 // pred_region
      _
    $region73: #{clusternet_contrast_forward.1} parent=1 // pred_fallthru
      _
    // Predicated region
    $region74: #{clusternet_contrast_forward.1} parent=1 // pred_check
      _
    $region75: #{clusternet_contrast_forward.1} parent=1 // pred_check_branch
      %1517 = sbr.rel (0) target = $region77
    $region76: #{clusternet_contrast_forward.1} parent=1 // pred_region
      _
    $region77: #{clusternet_contrast_forward.1} parent=1 // pred_fallthru
      _
    // Predicated region
    $region78: #{clusternet_contrast_forward.1} parent=1 // pred_check
      _
    $region79: #{clusternet_contrast_forward.1} parent=1 // pred_check_branch
      %1519 = sbr.rel (0) target = $region81
    $region80: #{clusternet_contrast_forward.1} parent=1 // pred_region
      %1520 = dma.done [#allocation3], 256
    $region81: #{clusternet_contrast_forward.1} parent=1 // pred_fallthru
      _
    %1521 = vsyncpa [#allocation3], 1

</llo_original>
